<compile_context>
chip_gen: v5e
topology: v5e:2x2
jax: 0.10.0
libtpu: 0.0.40
codegen_flags: <defaults>
</compile_context>

<pallas_src>
import math

import jax
import jax.numpy as jnp
from jax.experimental import pallas as pl
from jax.experimental.pallas import tpu as pltpu

NEG_SLOPE = 0.01  # nn.LeakyReLU() default


def _round_up(x, m):
    return (x + m - 1) // m * m


def _leaky_relu(x):
    return jnp.where(x >= 0, x, NEG_SLOPE * x)


# --------------------------------------------------------------------------- #
# Kernel: K-tiled fc1 + fused fc2 / head epilogue
# --------------------------------------------------------------------------- #
def _mlp_kernel(x_ref, w1_ref, b1_ref, w2_ref, b2_ref, wh_ref, bh_ref,
                diag_ref, out_ref, acc_ref):
    k = pl.program_id(1)

    @pl.when(k == 0)
    def _():
        acc_ref[...] = jnp.zeros_like(acc_ref)

    # fc1 partial product for this K tile (f32 accumulation in scratch).
    acc_ref[...] += jnp.dot(x_ref[...], w1_ref[...],
                            preferred_element_type=jnp.float32)

    @pl.when(k == pl.num_programs(1) - 1)
    def _():
        wdt = w2_ref.dtype
        h1 = _leaky_relu(acc_ref[...] + b1_ref[...])        # dropout (eval) -> id
        h2 = jnp.dot(h1.astype(wdt), w2_ref[...],
                     preferred_element_type=jnp.float32) + b2_ref[...]
        h2 = _leaky_relu(h2)                                 # dropout (eval) -> id
        y = jnp.dot(h2.astype(wdt), wh_ref[...],
                    preferred_element_type=jnp.float32) + bh_ref[...]
        # exp() only where the head column holds L's diagonal (EUP slot).
        out_ref[...] = jnp.where(diag_ref[...] > 0.5, jnp.exp(y), y)


# --------------------------------------------------------------------------- #
# Parameters
# --------------------------------------------------------------------------- #
def init_params(key, c_in, seq_len, d_model, output_size):
    """Deterministic PyTorch-style uniform(+-1/sqrt(fan_in)) init, f32."""
    d_in = c_in * seq_len
    tri = output_size * (output_size + 1) // 2

    def linear(k, fan_in, fan_out):
        kw, kb = jax.random.split(k)
        bound = 1.0 / math.sqrt(fan_in)
        w = jax.random.uniform(kw, (fan_in, fan_out), jnp.float32, -bound, bound)
        b = jax.random.uniform(kb, (fan_out,), jnp.float32, -bound, bound)
        return w, b

    k1, k2, k3, k4 = jax.random.split(key, 4)
    w1, b1 = linear(k1, d_in, d_model)          # fc1
    w2, b2 = linear(k2, d_model, d_model)       # fc2
    wp, bp = linear(k3, d_model, output_size)   # projection
    wl, bl = linear(k4, d_model, tri)           # fc_L
    return dict(w1=w1, b1=b1, w2=w2, b2=b2, wp=wp, bp=bp, wl=wl, bl=bl)


def prepare_params(params, output_size, *, weights_dtype=jnp.bfloat16, block_k=1024):
    """One-time host-side prep: pre-scatter fc_L, fuse heads, pad, choose K tile.

    weights_dtype=bf16 halves weight/activation DMA bytes and feeds the MXU at
    native bf16 rate; matmuls still accumulate in f32 (biases/mask stay f32).
    """
    w1, b1 = params["w1"], params["b1"]
    w2, b2 = params["w2"], params["b2"]
    wp, bp = params["wp"], params["bp"]
    wl, bl = params["wl"], params["bl"]

    d_in, d_model = w1.shape
    S = output_size

    # Pre-scatter fc_L into a dense lower-triangular layout: column r*S + c of
    # wl_full is wl[:, tri_idx(r, c)] for r >= c (row-major order matches
    # torch.tril_indices), else 0.  The kernel then emits L directly.
    rows, cols = jnp.tril_indices(S)
    flat_idx = rows * S + cols
    wl_full = jnp.zeros((d_model, S * S), jnp.float32).at[:, flat_idx].set(wl)
    bl_full = jnp.zeros((S * S,), jnp.float32).at[flat_idx].set(bl)

    # Fuse projection + fc_L into one head matmul: [mu | L_flat].
    wh = jnp.concatenate([wp, wl_full], axis=1)
    bh = jnp.concatenate([bp, bl_full], axis=0)

    # K-tiling for fc1: split d_in into nk tiles of tk (tk multiple of 128).
    d_in_128 = _round_up(d_in, 128)
    nk = pl.cdiv(d_in_128, block_k)
    tk = _round_up(pl.cdiv(d_in_128, nk), 128)
    d_in_pad = nk * tk

    d_mod_p = _round_up(d_model, 128)
    h = S + S * S
    h_p = _round_up(h, 128)

    def pad2(w, r, c):
        return jnp.pad(w, ((0, r - w.shape[0]), (0, c - w.shape[1])))

    def pad_bias(b, c):
        return jnp.pad(b, (0, c - b.shape[0])).reshape(1, c)

    # Mask of head columns that hold L's diagonal (exp applied there).
    diag_cols = S + jnp.arange(S) * (S + 1)
    diag_mask = jnp.zeros((h_p,), jnp.float32).at[diag_cols].set(1.0).reshape(1, h_p)

    return dict(
        w1=pad2(w1, d_in_pad, d_mod_p).astype(weights_dtype),
        b1=pad_bias(b1, d_mod_p),
        w2=pad2(w2, d_mod_p, d_mod_p).astype(weights_dtype),
        b2=pad_bias(b2, d_mod_p),
        wh=pad2(wh, d_mod_p, h_p).astype(weights_dtype),
        bh=pad_bias(bh, h_p),
        diag=diag_mask,
        d_in=d_in, d_in_pad=d_in_pad, tk=tk, nk=nk,
        d_mod_p=d_mod_p, S=S, h=h, h_p=h_p,
    )


# --------------------------------------------------------------------------- #
# Forward
# --------------------------------------------------------------------------- #
def model_forward(x_enc, pp, *, pred_len, c_out, cov_bool=True, block_b=256):
    """Equivalent of Model.forward(x_enc, EI_bool=False) -> (dec_out, {'L': L})."""
    B, T, N = x_enc.shape
    S = pp["S"]
    assert pred_len * c_out == S
    # PyTorch does dec_out = mu.reshape(B, pred_len, N) with N = c_in.
    assert c_out == N, "mu.reshape(B, pred_len, N) requires c_out == c_in"
    assert T * N == pp["d_in"]

    act_dtype = pp["w1"].dtype
    isz_w = jnp.dtype(act_dtype).itemsize
    d_in_pad, tk, nk = pp["d_in_pad"], pp["tk"], pp["nk"]
    d_mod_p, h_p = pp["d_mod_p"], pp["h_p"]

    # enc_embedding (DataEmbedding_NN) == flatten feeding fc1; cast to weight dtype.
    x_flat = x_enc.reshape(B, pp["d_in"]).astype(act_dtype)

    # Batch tiling: sublane grain is 16 for bf16 packing, 8 for f32.
    grain = 16 if act_dtype == jnp.bfloat16 else 8
    B_g = _round_up(B, grain)
    tb = _round_up(max(grain, min(block_b, B_g)), grain)
    B_pad = _round_up(B_g, tb)
    # Give both v7x TensorCores work on the "parallel" axis when batch allows.
    while B_pad // tb < 2 and tb >= 2 * grain:
        tb = max(grain, _round_up(tb // 2, grain))
        B_pad = _round_up(B_g, tb)

    x_pad = jnp.pad(x_flat, ((0, B_pad - B), (0, d_in_pad - pp["d_in"])))

    # VMEM budget (assume default 2-deep buffering everywhere; + headroom).
    need = (2 * tb * tk * isz_w                 # x tile
            + 2 * tk * d_mod_p * isz_w          # W1 tile (K-pipelined)
            + 2 * d_mod_p * d_mod_p * isz_w     # W2
            + 2 * d_mod_p * h_p * isz_w         # W_head
            + 2 * (2 * d_mod_p + 2 * h_p) * 4   # biases + diag mask
            + 2 * tb * h_p * 4                  # output tile
            + tb * d_mod_p * 4)                 # f32 accumulator scratch
    vmem_limit = int(min(max(int(need * 1.25), 32 * 1024 * 1024), 128 * 1024 * 1024))

    cost = pl.CostEstimate(
        flops=2 * B_pad * (d_in_pad * d_mod_p + d_mod_p * d_mod_p + d_mod_p * h_p),
        transcendentals=B_pad * h_p,
        bytes_accessed=(B_pad * d_in_pad * isz_w
                        + (d_in_pad * d_mod_p + d_mod_p * d_mod_p + d_mod_p * h_p) * isz_w
                        + (2 * d_mod_p + 2 * h_p) * 4
                        + B_pad * h_p * 4),
    )

    def run(single_buffer_weights):
        const2 = lambda i, k: (0, 0)  # weights stay VMEM-resident across the grid

        def const_spec(shape):
            if single_buffer_weights:
                # Grid-invariant operand: one buffer is enough (halves weight VMEM).
                return pl.BlockSpec(shape, const2, pipeline_mode=pl.Buffered(1))
            return pl.BlockSpec(shape, const2)

        return pl.pallas_call(
            _mlp_kernel,
            out_shape=jax.ShapeDtypeStruct((B_pad, h_p), jnp.float32),
            grid_spec=pltpu.PrefetchScalarGridSpec(
                num_scalar_prefetch=0,
                grid=(B_pad // tb, nk),                       # K (reduction) axis last
                in_specs=[
                    pl.BlockSpec((tb, tk), lambda i, k: (i, k)),        # x tile
                    pl.BlockSpec((tk, d_mod_p), lambda i, k: (k, 0)),   # W1 K-tile
                    const_spec((1, d_mod_p)),                           # b1
                    const_spec((d_mod_p, d_mod_p)),                     # W2
                    const_spec((1, d_mod_p)),                           # b2
                    const_spec((d_mod_p, h_p)),                         # W_head
                    const_spec((1, h_p)),                               # b_head
                    const_spec((1, h_p)),                               # diag mask
                ],
                out_specs=pl.BlockSpec((tb, h_p), lambda i, k: (i, 0)),
                scratch_shapes=[pltpu.VMEM((tb, d_mod_p), jnp.float32)],
            ),
            compiler_params=pltpu.CompilerParams(
                dimension_semantics=("parallel", "arbitrary"),
                vmem_limit_bytes=vmem_limit),
            cost_estimate=cost,
        )(x_pad, pp["w1"], pp["b1"], pp["w2"], pp["b2"],
          pp["wh"], pp["bh"], pp["diag"])

    try:
        out = run(True)
    except Exception:
        # pipeline_mode=pl.Buffered(1) not accepted by this JAX/Mosaic version;
        # identical semantics with default double-buffered invariant weights.
        out = run(False)

    out = out[:B]
    dec_out = out[:, :S].reshape(B, pred_len, N)
    if cov_bool:
        L = out[:, S:S + S * S].reshape(B, S, S)
    else:
        L = 0
    return dec_out, {"L": L}


# --------------------------------------------------------------------------- #
# Pure-JAX reference (mirrors the PyTorch forward) for correctness checking
# --------------------------------------------------------------------------- #
def reference_forward(x_enc, params, *, pred_len, c_out):
    B, T, N = x_enc.shape
    S = pred_len * c_out
    x = x_enc.reshape(B, T * N)
    h1 = _leaky_relu(x @ params["w1"] + params["b1"])
    h2 = _leaky_relu(h1 @ params["w2"] + params["b2"])
    mu = h2 @ params["wp"] + params["bp"]
    le = h2 @ params["wl"] + params["bl"]
    rows, cols = jnp.tril_indices(S)
    L = jnp.zeros((B, S, S), jnp.float32).at[:, rows, cols].set(le)
    d = jnp.arange(S)
    L = L.at[:, d, d].set(jnp.exp(L[:, d, d]))
    return mu.reshape(B, pred_len, N), L


if __name__ == "__main__":
    # Small config consistent with the module (c_out == c_in so the final
    # reshape (B, pred_len, N) is valid).
    B, seq_len, c_in = 2, 8, 4
    c_out, pred_len = 4, 4
    d_model = 32
    output_size = pred_len * c_out

    key = jax.random.PRNGKey(0)
    k_x, k_p = jax.random.split(key)
    x_enc = jax.random.normal(k_x, (B, seq_len, c_in), jnp.float32)
    params = init_params(k_p, c_in, seq_len, d_model, output_size)
    prepped = prepare_params(params, output_size)  # bf16 weights/activations

    dec_out, ei_items = model_forward(x_enc, prepped,
                                      pred_len=pred_len, c_out=c_out,
                                      cov_bool=True)
    jax.block_until_ready(dec_out)
    jax.block_until_ready(ei_items["L"])

    assert dec_out.shape == (B, pred_len, c_in)
    assert ei_items["L"].shape == (B, output_size, output_size)

    ref_dec, ref_L = reference_forward(x_enc, params,
                                       pred_len=pred_len, c_out=c_out)

    def close(a, b, atol=5e-2, rtol=5e-2):
        return bool(jnp.all(jnp.abs(a - b) <= atol + rtol * jnp.abs(b)))

    assert close(dec_out, ref_dec), "dec_out mismatch vs reference"
    assert close(ei_items["L"], ref_L), "L mismatch vs reference"
    print("KERNEL_OK")
</pallas_src>

<mosaic_0001>
module attributes {stable_mosaic.version = 11 : i64} {
  func.func @_mlp_kernel(%arg0: i32, %arg1: i32, %arg2: memref<16x128xbf16, #tpu.memory_space<vmem>>, %arg3: memref<128x128xbf16, #tpu.memory_space<vmem>>, %arg4: memref<1x128xf32, #tpu.memory_space<vmem>>, %arg5: memref<128x128xbf16, #tpu.memory_space<vmem>>, %arg6: memref<1x128xf32, #tpu.memory_space<vmem>>, %arg7: memref<128x384xbf16, #tpu.memory_space<vmem>>, %arg8: memref<1x384xf32, #tpu.memory_space<vmem>>, %arg9: memref<1x384xf32, #tpu.memory_space<vmem>>, %arg10: memref<16x384xf32, #tpu.memory_space<vmem>>, %arg11: memref<16x128xf32, #tpu.memory_space<vmem>>) attributes {dimension_semantics = [#tpu.dimension_semantics<parallel>, #tpu.dimension_semantics<arbitrary>], iteration_bounds = array<i64: 1, 1>, scalar_prefetch = 0 : i64, scratch_operands = 1 : i64, tpu.core_type = #tpu.core_type<tc>, window_params = [{transform_indices = @transform_0, window_bounds = array<i64: 16, 128>}, {transform_indices = @transform_1, window_bounds = array<i64: 128, 128>}, {pipeline_mode = #tpu.pipeline_mode<synchronous>, transform_indices = @transform_2, window_bounds = array<i64: 1, 128>}, {pipeline_mode = #tpu.pipeline_mode<synchronous>, transform_indices = @transform_3, window_bounds = array<i64: 128, 128>}, {pipeline_mode = #tpu.pipeline_mode<synchronous>, transform_indices = @transform_4, window_bounds = array<i64: 1, 128>}, {pipeline_mode = #tpu.pipeline_mode<synchronous>, transform_indices = @transform_5, window_bounds = array<i64: 128, 384>}, {pipeline_mode = #tpu.pipeline_mode<synchronous>, transform_indices = @transform_6, window_bounds = array<i64: 1, 384>}, {pipeline_mode = #tpu.pipeline_mode<synchronous>, transform_indices = @transform_7, window_bounds = array<i64: 1, 384>}, {transform_indices = @transform_8, window_bounds = array<i64: 16, 384>}]} {
    %c0_i32 = arith.constant 0 : i32
    %0 = arith.cmpi eq, %arg1, %c0_i32 : i32
    %1 = arith.extui %0 : i1 to i32
    %c0_i32_0 = arith.constant 0 : i32
    %2 = arith.cmpi ne, %1, %c0_i32_0 : i32
    scf.if %2 {
      %cst_10 = arith.constant 0.000000e+00 : f32
      %12 = vector.broadcast %cst_10 : f32 to vector<16x128xf32>
      %c0_11 = arith.constant 0 : index
      %c0_12 = arith.constant 0 : index
      %13 = vector.load %arg11[%c0_11, %c0_12] : memref<16x128xf32, #tpu.memory_space<vmem>>, vector<16x128xf32>
      tpu.vector_store %arg11[%c0_11, %c0_12], %12 {strides = array<i32>} : memref<16x128xf32, #tpu.memory_space<vmem>>, vector<16x128xf32>,
    } else {
    }
    %c0 = arith.constant 0 : index
    %c0_1 = arith.constant 0 : index
    %3 = vector.load %arg11[%c0, %c0_1] : memref<16x128xf32, #tpu.memory_space<vmem>>, vector<16x128xf32>
    %c0_2 = arith.constant 0 : index
    %c0_3 = arith.constant 0 : index
    %4 = vector.load %arg2[%c0_2, %c0_3] : memref<16x128xbf16, #tpu.memory_space<vmem>>, vector<16x128xbf16>
    %c0_4 = arith.constant 0 : index
    %c0_5 = arith.constant 0 : index
    %5 = vector.load %arg3[%c0_4, %c0_5] : memref<128x128xbf16, #tpu.memory_space<vmem>>, vector<128x128xbf16>
    %cst = arith.constant dense<0.000000e+00> : vector<16x128xf32>
    %6 = tpu.matmul %4, %5, %cst {dimension_numbers = #tpu.dot_dimension_numbers<[1], [0], [0], [1], [0, 0, 1, 1], [], []>} : vector<16x128xbf16>, vector<128x128xbf16>, vector<16x128xf32> -> vector<16x128xf32>
    %7 = arith.addf %3, %6 : vector<16x128xf32>
    %c0_6 = arith.constant 0 : index
    %c0_7 = arith.constant 0 : index
    %8 = vector.load %arg11[%c0_6, %c0_7] : memref<16x128xf32, #tpu.memory_space<vmem>>, vector<16x128xf32>
    tpu.vector_store %arg11[%c0_6, %c0_7], %7 {strides = array<i32>} : memref<16x128xf32, #tpu.memory_space<vmem>>, vector<16x128xf32>,
    %c0_i32_8 = arith.constant 0 : i32
    %9 = arith.cmpi eq, %arg1, %c0_i32_8 : i32
    %10 = arith.extui %9 : i1 to i32
    %c0_i32_9 = arith.constant 0 : i32
    %11 = arith.cmpi ne, %10, %c0_i32_9 : i32
    scf.if %11 {
      %c0_10 = arith.constant 0 : index
      %c0_11 = arith.constant 0 : index
      %12 = vector.load %arg11[%c0_10, %c0_11] : memref<16x128xf32, #tpu.memory_space<vmem>>, vector<16x128xf32>
      %c0_12 = arith.constant 0 : index
      %c0_13 = arith.constant 0 : index
      %13 = vector.load %arg4[%c0_12, %c0_13] : memref<1x128xf32, #tpu.memory_space<vmem>>, vector<1x128xf32>
      %14 = vector.broadcast %13 : vector<1x128xf32> to vector<16x128xf32>
      %15 = arith.addf %12, %14 : vector<16x128xf32>
      %cst_14 = arith.constant 0.000000e+00 : f32
      %16 = vector.broadcast %cst_14 : f32 to vector<16x128xf32>
      %17 = arith.cmpf oge, %15, %16 : vector<16x128xf32>
      %cst_15 = arith.constant 0.00999999977 : f32
      %18 = vector.broadcast %cst_15 : f32 to vector<16x128xf32>
      %19 = arith.mulf %18, %15 : vector<16x128xf32>
      %20 = arith.select %17, %15, %19 : vector<16x128xi1>, vector<16x128xf32>
      %21 = arith.truncf %20 : vector<16x128xf32> to vector<16x128xbf16>
      %c0_16 = arith.constant 0 : index
      %c0_17 = arith.constant 0 : index
      %22 = vector.load %arg5[%c0_16, %c0_17] : memref<128x128xbf16, #tpu.memory_space<vmem>>, vector<128x128xbf16>
      %cst_18 = arith.constant dense<0.000000e+00> : vector<16x128xf32>
      %23 = tpu.matmul %21, %22, %cst_18 {dimension_numbers = #tpu.dot_dimension_numbers<[1], [0], [0], [1], [0, 0, 1, 1], [], []>} : vector<16x128xbf16>, vector<128x128xbf16>, vector<16x128xf32> -> vector<16x128xf32>
      %c0_19 = arith.constant 0 : index
      %c0_20 = arith.constant 0 : index
      %24 = vector.load %arg6[%c0_19, %c0_20] : memref<1x128xf32, #tpu.memory_space<vmem>>, vector<1x128xf32>
      %25 = vector.broadcast %24 : vector<1x128xf32> to vector<16x128xf32>
      %26 = arith.addf %23, %25 : vector<16x128xf32>
      %cst_21 = arith.constant 0.000000e+00 : f32
      %27 = vector.broadcast %cst_21 : f32 to vector<16x128xf32>
      %28 = arith.cmpf oge, %26, %27 : vector<16x128xf32>
      %cst_22 = arith.constant 0.00999999977 : f32
      %29 = vector.broadcast %cst_22 : f32 to vector<16x128xf32>
      %30 = arith.mulf %29, %26 : vector<16x128xf32>
      %31 = arith.select %28, %26, %30 : vector<16x128xi1>, vector<16x128xf32>
      %32 = arith.truncf %31 : vector<16x128xf32> to vector<16x128xbf16>
      %c0_23 = arith.constant 0 : index
      %c0_24 = arith.constant 0 : index
      %33 = vector.load %arg7[%c0_23, %c0_24] : memref<128x384xbf16, #tpu.memory_space<vmem>>, vector<128x384xbf16>
      %cst_25 = arith.constant dense<0.000000e+00> : vector<16x384xf32>
      %34 = tpu.matmul %32, %33, %cst_25 {dimension_numbers = #tpu.dot_dimension_numbers<[1], [0], [0], [1], [0, 0, 1, 1], [], []>} : vector<16x128xbf16>, vector<128x384xbf16>, vector<16x384xf32> -> vector<16x384xf32>
      %c0_26 = arith.constant 0 : index
      %c0_27 = arith.constant 0 : index
      %35 = vector.load %arg8[%c0_26, %c0_27] : memref<1x384xf32, #tpu.memory_space<vmem>>, vector<1x384xf32>
      %36 = vector.broadcast %35 : vector<1x384xf32> to vector<16x384xf32>
      %37 = arith.addf %34, %36 : vector<16x384xf32>
      %c0_28 = arith.constant 0 : index
      %c0_29 = arith.constant 0 : index
      %38 = vector.load %arg9[%c0_28, %c0_29] : memref<1x384xf32, #tpu.memory_space<vmem>>, vector<1x384xf32>
      %cst_30 = arith.constant 5.000000e-01 : f32
      %39 = vector.broadcast %cst_30 : f32 to vector<1x384xf32>
      %40 = arith.cmpf ogt, %38, %39 : vector<1x384xf32>
      %41 = math.exp %37 : vector<16x384xf32>
      %42 = vector.shape_cast %40 : vector<1x384xi1> to vector<1x384xi1>
      %43 = vector.broadcast %42 : vector<1x384xi1> to vector<16x384xi1>
      %44 = arith.select %43, %41, %37 : vector<16x384xi1>, vector<16x384xf32>
      %c0_31 = arith.constant 0 : index
      %c0_32 = arith.constant 0 : index
      %45 = vector.load %arg10[%c0_31, %c0_32] : memref<16x384xf32, #tpu.memory_space<vmem>>, vector<16x384xf32>
      tpu.vector_store %arg10[%c0_31, %c0_32], %44 {strides = array<i32>} : memref<16x384xf32, #tpu.memory_space<vmem>>, vector<16x384xf32>,
    } else {
    }
    return
  }
  func.func @transform_0(%arg0: i32, %arg1: i32) -> (i32, i32) {
    %c0_i32 = arith.constant 0 : i32
    return %arg0, %arg1 : i32, i32
  }
  func.func @transform_1(%arg0: i32, %arg1: i32) -> (i32, i32) {
    %c0_i32 = arith.constant 0 : i32
    %c0_i32_0 = arith.constant 0 : i32
    return %arg1, %c0_i32 : i32, i32
  }
  func.func @transform_2(%arg0: i32, %arg1: i32) -> (i32, i32) {
    %c0_i32 = arith.constant 0 : i32
    %c0_i32_0 = arith.constant 0 : i32
    %c0_i32_1 = arith.constant 0 : i32
    return %c0_i32, %c0_i32_0 : i32, i32
  }
  func.func @transform_3(%arg0: i32, %arg1: i32) -> (i32, i32) {
    %c0_i32 = arith.constant 0 : i32
    %c0_i32_0 = arith.constant 0 : i32
    %c0_i32_1 = arith.constant 0 : i32
    return %c0_i32, %c0_i32_0 : i32, i32
  }
  func.func @transform_4(%arg0: i32, %arg1: i32) -> (i32, i32) {
    %c0_i32 = arith.constant 0 : i32
    %c0_i32_0 = arith.constant 0 : i32
    %c0_i32_1 = arith.constant 0 : i32
    return %c0_i32, %c0_i32_0 : i32, i32
  }
  func.func @transform_5(%arg0: i32, %arg1: i32) -> (i32, i32) {
    %c0_i32 = arith.constant 0 : i32
    %c0_i32_0 = arith.constant 0 : i32
    %c0_i32_1 = arith.constant 0 : i32
    return %c0_i32, %c0_i32_0 : i32, i32
  }
  func.func @transform_6(%arg0: i32, %arg1: i32) -> (i32, i32) {
    %c0_i32 = arith.constant 0 : i32
    %c0_i32_0 = arith.constant 0 : i32
    %c0_i32_1 = arith.constant 0 : i32
    return %c0_i32, %c0_i32_0 : i32, i32
  }
  func.func @transform_7(%arg0: i32, %arg1: i32) -> (i32, i32) {
    %c0_i32 = arith.constant 0 : i32
    %c0_i32_0 = arith.constant 0 : i32
    %c0_i32_1 = arith.constant 0 : i32
    return %c0_i32, %c0_i32_0 : i32, i32
  }
  func.func @transform_8(%arg0: i32, %arg1: i32) -> (i32, i32) {
    %c0_i32 = arith.constant 0 : i32
    %c0_i32_0 = arith.constant 0 : i32
    return %arg0, %c0_i32 : i32, i32
  }
}

module attributes {stable_mosaic.version = 11 : i64} {
  func.func @_mlp_kernel(%arg0: i32, %arg1: i32, %arg2: memref<16x128xbf16, #tpu.memory_space<vmem>>, %arg3: memref<128x128xbf16, #tpu.memory_space<vmem>>, %arg4: memref<1x128xf32, #tpu.memory_space<vmem>>, %arg5: memref<128x128xbf16, #tpu.memory_space<vmem>>, %arg6: memref<1x128xf32, #tpu.memory_space<vmem>>, %arg7: memref<128x384xbf16, #tpu.memory_space<vmem>>, %arg8: memref<1x384xf32, #tpu.memory_space<vmem>>, %arg9: memref<1x384xf32, #tpu.memory_space<vmem>>, %arg10: memref<16x384xf32, #tpu.memory_space<vmem>>, %arg11: memref<16x128xf32, #tpu.memory_space<vmem>>) attributes {dimension_semantics = [#tpu.dimension_semantics<parallel>, #tpu.dimension_semantics<arbitrary>], iteration_bounds = array<i64: 1, 1>, scalar_prefetch = 0 : i64, scratch_operands = 1 : i64, tpu.core_type = #tpu.core_type<tc>, window_params = [{transform_indices = @transform_0, window_bounds = array<i64: 16, 128>}, {transform_indices = @transform_1, window_bounds = array<i64: 128, 128>}, {pipeline_mode = #tpu.pipeline_mode<synchronous>, transform_indices = @transform_2, window_bounds = array<i64: 1, 128>}, {pipeline_mode = #tpu.pipeline_mode<synchronous>, transform_indices = @transform_3, window_bounds = array<i64: 128, 128>}, {pipeline_mode = #tpu.pipeline_mode<synchronous>, transform_indices = @transform_4, window_bounds = array<i64: 1, 128>}, {pipeline_mode = #tpu.pipeline_mode<synchronous>, transform_indices = @transform_5, window_bounds = array<i64: 128, 384>}, {pipeline_mode = #tpu.pipeline_mode<synchronous>, transform_indices = @transform_6, window_bounds = array<i64: 1, 384>}, {pipeline_mode = #tpu.pipeline_mode<synchronous>, transform_indices = @transform_7, window_bounds = array<i64: 1, 384>}, {transform_indices = @transform_8, window_bounds = array<i64: 16, 384>}]} {
    %c0_i32 = arith.constant 0 : i32
    %0 = arith.cmpi eq, %arg1, %c0_i32 : i32
    %1 = arith.extui %0 : i1 to i32
    %c0_i32_0 = arith.constant 0 : i32
    %2 = arith.cmpi ne, %1, %c0_i32_0 : i32
    scf.if %2 {
      %cst_10 = arith.constant 0.000000e+00 : f32
      %12 = vector.broadcast %cst_10 : f32 to vector<16x128xf32>
      %c0_11 = arith.constant 0 : index
      %c0_12 = arith.constant 0 : index
      %13 = vector.load %arg11[%c0_11, %c0_12] : memref<16x128xf32, #tpu.memory_space<vmem>>, vector<16x128xf32>
      tpu.vector_store %arg11[%c0_11, %c0_12], %12 {strides = array<i32>} : memref<16x128xf32, #tpu.memory_space<vmem>>, vector<16x128xf32>,
    } else {
    }
    %c0 = arith.constant 0 : index
    %c0_1 = arith.constant 0 : index
    %3 = vector.load %arg11[%c0, %c0_1] : memref<16x128xf32, #tpu.memory_space<vmem>>, vector<16x128xf32>
    %c0_2 = arith.constant 0 : index
    %c0_3 = arith.constant 0 : index
    %4 = vector.load %arg2[%c0_2, %c0_3] : memref<16x128xbf16, #tpu.memory_space<vmem>>, vector<16x128xbf16>
    %c0_4 = arith.constant 0 : index
    %c0_5 = arith.constant 0 : index
    %5 = vector.load %arg3[%c0_4, %c0_5] : memref<128x128xbf16, #tpu.memory_space<vmem>>, vector<128x128xbf16>
    %cst = arith.constant dense<0.000000e+00> : vector<16x128xf32>
    %6 = tpu.matmul %4, %5, %cst {dimension_numbers = #tpu.dot_dimension_numbers<[1], [0], [0], [1], [0, 0, 1, 1], [], []>} : vector<16x128xbf16>, vector<128x128xbf16>, vector<16x128xf32> -> vector<16x128xf32>
    %7 = arith.addf %3, %6 : vector<16x128xf32>
    %c0_6 = arith.constant 0 : index
    %c0_7 = arith.constant 0 : index
    %8 = vector.load %arg11[%c0_6, %c0_7] : memref<16x128xf32, #tpu.memory_space<vmem>>, vector<16x128xf32>
    tpu.vector_store %arg11[%c0_6, %c0_7], %7 {strides = array<i32>} : memref<16x128xf32, #tpu.memory_space<vmem>>, vector<16x128xf32>,
    %c0_i32_8 = arith.constant 0 : i32
    %9 = arith.cmpi eq, %arg1, %c0_i32_8 : i32
    %10 = arith.extui %9 : i1 to i32
    %c0_i32_9 = arith.constant 0 : i32
    %11 = arith.cmpi ne, %10, %c0_i32_9 : i32
    scf.if %11 {
      %c0_10 = arith.constant 0 : index
      %c0_11 = arith.constant 0 : index
      %12 = vector.load %arg11[%c0_10, %c0_11] : memref<16x128xf32, #tpu.memory_space<vmem>>, vector<16x128xf32>
      %c0_12 = arith.constant 0 : index
      %c0_13 = arith.constant 0 : index
      %13 = vector.load %arg4[%c0_12, %c0_13] : memref<1x128xf32, #tpu.memory_space<vmem>>, vector<1x128xf32>
      %14 = vector.broadcast %13 : vector<1x128xf32> to vector<16x128xf32>
      %15 = arith.addf %12, %14 : vector<16x128xf32>
      %cst_14 = arith.constant 0.000000e+00 : f32
      %16 = vector.broadcast %cst_14 : f32 to vector<16x128xf32>
      %17 = arith.cmpf oge, %15, %16 : vector<16x128xf32>
      %cst_15 = arith.constant 0.00999999977 : f32
      %18 = vector.broadcast %cst_15 : f32 to vector<16x128xf32>
      %19 = arith.mulf %18, %15 : vector<16x128xf32>
      %20 = arith.select %17, %15, %19 : vector<16x128xi1>, vector<16x128xf32>
      %21 = arith.truncf %20 : vector<16x128xf32> to vector<16x128xbf16>
      %c0_16 = arith.constant 0 : index
      %c0_17 = arith.constant 0 : index
      %22 = vector.load %arg5[%c0_16, %c0_17] : memref<128x128xbf16, #tpu.memory_space<vmem>>, vector<128x128xbf16>
      %cst_18 = arith.constant dense<0.000000e+00> : vector<16x128xf32>
      %23 = tpu.matmul %21, %22, %cst_18 {dimension_numbers = #tpu.dot_dimension_numbers<[1], [0], [0], [1], [0, 0, 1, 1], [], []>} : vector<16x128xbf16>, vector<128x128xbf16>, vector<16x128xf32> -> vector<16x128xf32>
      %c0_19 = arith.constant 0 : index
      %c0_20 = arith.constant 0 : index
      %24 = vector.load %arg6[%c0_19, %c0_20] : memref<1x128xf32, #tpu.memory_space<vmem>>, vector<1x128xf32>
      %25 = vector.broadcast %24 : vector<1x128xf32> to vector<16x128xf32>
      %26 = arith.addf %23, %25 : vector<16x128xf32>
      %cst_21 = arith.constant 0.000000e+00 : f32
      %27 = vector.broadcast %cst_21 : f32 to vector<16x128xf32>
      %28 = arith.cmpf oge, %26, %27 : vector<16x128xf32>
      %cst_22 = arith.constant 0.00999999977 : f32
      %29 = vector.broadcast %cst_22 : f32 to vector<16x128xf32>
      %30 = arith.mulf %29, %26 : vector<16x128xf32>
      %31 = arith.select %28, %26, %30 : vector<16x128xi1>, vector<16x128xf32>
      %32 = arith.truncf %31 : vector<16x128xf32> to vector<16x128xbf16>
      %c0_23 = arith.constant 0 : index
      %c0_24 = arith.constant 0 : index
      %33 = vector.load %arg7[%c0_23, %c0_24] : memref<128x384xbf16, #tpu.memory_space<vmem>>, vector<128x384xbf16>
      %cst_25 = arith.constant dense<0.000000e+00> : vector<16x384xf32>
      %34 = tpu.matmul %32, %33, %cst_25 {dimension_numbers = #tpu.dot_dimension_numbers<[1], [0], [0], [1], [0, 0, 1, 1], [], []>} : vector<16x128xbf16>, vector<128x384xbf16>, vector<16x384xf32> -> vector<16x384xf32>
      %c0_26 = arith.constant 0 : index
      %c0_27 = arith.constant 0 : index
      %35 = vector.load %arg8[%c0_26, %c0_27] : memref<1x384xf32, #tpu.memory_space<vmem>>, vector<1x384xf32>
      %36 = vector.broadcast %35 : vector<1x384xf32> to vector<16x384xf32>
      %37 = arith.addf %34, %36 : vector<16x384xf32>
      %c0_28 = arith.constant 0 : index
      %c0_29 = arith.constant 0 : index
      %38 = vector.load %arg9[%c0_28, %c0_29] : memref<1x384xf32, #tpu.memory_space<vmem>>, vector<1x384xf32>
      %cst_30 = arith.constant 5.000000e-01 : f32
      %39 = vector.broadcast %cst_30 : f32 to vector<1x384xf32>
      %40 = arith.cmpf ogt, %38, %39 : vector<1x384xf32>
      %41 = math.exp %37 : vector<16x384xf32>
      %42 = vector.shape_cast %40 : vector<1x384xi1> to vector<1x384xi1>
      %43 = vector.broadcast %42 : vector<1x384xi1> to vector<16x384xi1>
      %44 = arith.select %43, %41, %37 : vector<16x384xi1>, vector<16x384xf32>
      %c0_31 = arith.constant 0 : index
      %c0_32 = arith.constant 0 : index
      %45 = vector.load %arg10[%c0_31, %c0_32] : memref<16x384xf32, #tpu.memory_space<vmem>>, vector<16x384xf32>
      tpu.vector_store %arg10[%c0_31, %c0_32], %44 {strides = array<i32>} : memref<16x384xf32, #tpu.memory_space<vmem>>, vector<16x384xf32>,
    } else {
    }
    return
  }
  func.func @transform_0(%arg0: i32, %arg1: i32) -> (i32, i32) {
    %c0_i32 = arith.constant 0 : i32
    return %arg0, %arg1 : i32, i32
  }
  func.func @transform_1(%arg0: i32, %arg1: i32) -> (i32, i32) {
    %c0_i32 = arith.constant 0 : i32
    %c0_i32_0 = arith.constant 0 : i32
    return %arg1, %c0_i32 : i32, i32
  }
  func.func @transform_2(%arg0: i32, %arg1: i32) -> (i32, i32) {
    %c0_i32 = arith.constant 0 : i32
    %c0_i32_0 = arith.constant 0 : i32
    %c0_i32_1 = arith.constant 0 : i32
    return %c0_i32, %c0_i32_0 : i32, i32
  }
  func.func @transform_3(%arg0: i32, %arg1: i32) -> (i32, i32) {
    %c0_i32 = arith.constant 0 : i32
    %c0_i32_0 = arith.constant 0 : i32
    %c0_i32_1 = arith.constant 0 : i32
    return %c0_i32, %c0_i32_0 : i32, i32
  }
  func.func @transform_4(%arg0: i32, %arg1: i32) -> (i32, i32) {
    %c0_i32 = arith.constant 0 : i32
    %c0_i32_0 = arith.constant 0 : i32
    %c0_i32_1 = arith.constant 0 : i32
    return %c0_i32, %c0_i32_0 : i32, i32
  }
  func.func @transform_5(%arg0: i32, %arg1: i32) -> (i32, i32) {
    %c0_i32 = arith.constant 0 : i32
    %c0_i32_0 = arith.constant 0 : i32
    %c0_i32_1 = arith.constant 0 : i32
    return %c0_i32, %c0_i32_0 : i32, i32
  }
  func.func @transform_6(%arg0: i32, %arg1: i32) -> (i32, i32) {
    %c0_i32 = arith.constant 0 : i32
    %c0_i32_0 = arith.constant 0 : i32
    %c0_i32_1 = arith.constant 0 : i32
    return %c0_i32, %c0_i32_0 : i32, i32
  }
  func.func @transform_7(%arg0: i32, %arg1: i32) -> (i32, i32) {
    %c0_i32 = arith.constant 0 : i32
    %c0_i32_0 = arith.constant 0 : i32
    %c0_i32_1 = arith.constant 0 : i32
    return %c0_i32, %c0_i32_0 : i32, i32
  }
  func.func @transform_8(%arg0: i32, %arg1: i32) -> (i32, i32) {
    %c0_i32 = arith.constant 0 : i32
    %c0_i32_0 = arith.constant 0 : i32
    return %arg0, %c0_i32 : i32, i32
  }
}

</mosaic_0001>

<llo_original>
// kernel: tpu_custom_call.1
$region0: #{tpu_custom_call.1}
  #allocation0 [shape = 'u32[]', space=smem, size = 0x4, offset = 0x4, fixed_abs, tag = 'smem constant byte address 0x4 - core index']
  #allocation1 [shape = 'u32[72,128]{1,0:T(1,128)}', space=vmem, size = 0x9000, scoped, tag = 'internal scratch']
  #allocation2 [shape = 'f32[16,128]{1,0:T(8,128)}', space=vmem, size = 0x2000, scoped, tag = 'scratch operand']
  %s0 = inlined_call_operand.hbm [shape: bf16[16,128], index: 0, kind: input, shape index: {}]
  %s1 = inlined_call_operand.hbm [shape: bf16[128,128], index: 1, kind: input, shape index: {}]
  %s2 = inlined_call_operand.hbm [shape: f32[1,128], index: 2, kind: input, shape index: {}]
  %s3 = inlined_call_operand.hbm [shape: bf16[128,128], index: 3, kind: input, shape index: {}]
  %s4 = inlined_call_operand.hbm [shape: f32[1,128], index: 4, kind: input, shape index: {}]
  %s5 = inlined_call_operand.hbm [shape: bf16[128,384], index: 5, kind: input, shape index: {}]
  %s6 = inlined_call_operand.vmem [shape: f32[1,384], index: 6, kind: input, shape index: {}]
  %s7 = inlined_call_operand.vmem [shape: f32[1,384], index: 7, kind: input, shape index: {}]
  %s8 = inlined_call_operand.hbm [shape: f32[16,384], index: 8, kind: output, shape index: {}]
  %s9 = sld [smem:[#allocation0]]
  $region74: #{tpu_custom_call.1} parent=0
    _
  %s11 = ssub.s32 1, %s9
  %s12 = scalar_select 0, %s11, %s9
  $region1: #{tpu_custom_call.1} parent=0
    #allocation3 [shape = 'u8[4096]{0}', space=vmem, size = 0x1000, scoped, tag = 'input window, operand 0, single buffered']
    #allocation4 [shape = 's32[1]{0}', space=sflag, size = 0x4, scoped, tag = 'scoped memory for tpu_custom_call.1']
    #allocation5 [shape = 's32[1]{0}', space=sflag, size = 0x4, scoped, tag = 'scoped memory for tpu_custom_call.1']
    #allocation6 [shape = 'u8[32768]{0}', space=vmem, size = 0x8000, scoped, tag = 'input window, operand 1, single buffered']
    #allocation7 [shape = 's32[1]{0}', space=sflag, size = 0x4, scoped, tag = 'scoped memory for tpu_custom_call.1']
    #allocation8 [shape = 'u8[512]{0}', space=vmem, size = 0x400, scoped, tag = 'input window, operand 2, single buffered']
    #allocation9 [shape = 'u8[32768]{0}', space=vmem, size = 0x8000, scoped, tag = 'input window, operand 3, single buffered']
    #allocation10 [shape = 's32[1]{0}', space=sflag, size = 0x4, scoped, tag = 'scoped memory for tpu_custom_call.1']
    #allocation11 [shape = 'u8[512]{0}', space=vmem, size = 0x400, scoped, tag = 'input window, operand 4, single buffered']
    #allocation12 [shape = 'u8[98304]{0}', space=vmem, size = 0x18000, scoped, tag = 'input window, operand 5, single buffered']
    #allocation13 [shape = 's32[1]{0}', space=sflag, size = 0x4, scoped, tag = 'scoped memory for tpu_custom_call.1']
    #allocation14 [shape = 'u8[24576]{0}', space=vmem, size = 0x6000, scoped, tag = 'output window, operand 0, single buffered']
    %13 = vsyncpa [#allocation4], 0
    %14 = vsyncpa [#allocation7], 0
    %15 = vsyncpa [#allocation10], 0
    %16 = vsyncpa [#allocation13], 0
    %17 = vsyncpa [#allocation5], 0
    // Predicated region
    $region2: #{tpu_custom_call.1} parent=1 // pred_check
      _
    $region3: #{tpu_custom_call.1} parent=1 // pred_check_branch
      %19 = sbr.rel (0) target = $region5
    $region4: #{tpu_custom_call.1} parent=1 // pred_region
      %21 = vsyncadd [#allocation4], 0
      %s22 = sshll.u32 %s0, 4
      %s23 = int_to_ptr.hbm [resolvable:$true] %s22
      %s24 = sshll.u32 [#allocation3], 4
      %s25 = int_to_ptr.vmem [resolvable:$true] %s24
      %30 = dma.hbm_to_vmem [thread:$0]  %s23, 128, %s25, [#allocation4], 64, 64, 4
    $region5: #{tpu_custom_call.1} parent=1 // pred_fallthru
      _
    // Predicated region
    $region6: #{tpu_custom_call.1} parent=1 // pred_check
      _
    $region7: #{tpu_custom_call.1} parent=1 // pred_check_branch
      %32 = sbr.rel (0) target = $region9
    $region8: #{tpu_custom_call.1} parent=1 // pred_region
      %34 = vsyncadd [#allocation7], 0
      %s35 = sshll.u32 %s1, 4
      %s36 = int_to_ptr.hbm [resolvable:$true] %s35
      %s37 = sshll.u32 [#allocation6], 4
      %s38 = int_to_ptr.vmem [resolvable:$true] %s37
      %43 = dma.hbm_to_vmem [thread:$0]  %s36, 1024, %s38, [#allocation7], 64, 64, 4
    $region9: #{tpu_custom_call.1} parent=1 // pred_fallthru
      _
    // Predicated region
    $region10: #{tpu_custom_call.1} parent=1 // pred_check
      _
    $region11: #{tpu_custom_call.1} parent=1 // pred_check_branch
      %45 = sbr.rel (0) target = $region13
    $region12: #{tpu_custom_call.1} parent=1 // pred_region
      %47 = vsyncadd [#allocation7], 0
      %s49 = sshll.u32 %s2, 4
      %s50 = int_to_ptr.hbm [resolvable:$true] %s49
      %s51 = sshll.u32 [#allocation8], 4
      %s52 = int_to_ptr.vmem [resolvable:$true] %s51
      %54 = dma.hbm_to_vmem [thread:$0]  %s50, 16, %s52, [#allocation7]
    $region13: #{tpu_custom_call.1} parent=1 // pred_fallthru
      _
    // Predicated region
    $region14: #{tpu_custom_call.1} parent=1 // pred_check
      _
    $region15: #{tpu_custom_call.1} parent=1 // pred_check_branch
      %56 = sbr.rel (0) target = $region17
    $region16: #{tpu_custom_call.1} parent=1 // pred_region
      %58 = vsyncadd [#allocation10], 0
      %s59 = sshll.u32 %s3, 4
      %s60 = int_to_ptr.hbm [resolvable:$true] %s59
      %s61 = sshll.u32 [#allocation9], 4
      %s62 = int_to_ptr.vmem [resolvable:$true] %s61
      %67 = dma.hbm_to_vmem [thread:$0]  %s60, 1024, %s62, [#allocation10], 64, 64, 4
    $region17: #{tpu_custom_call.1} parent=1 // pred_fallthru
      _
    // Predicated region
    $region18: #{tpu_custom_call.1} parent=1 // pred_check
      _
    $region19: #{tpu_custom_call.1} parent=1 // pred_check_branch
      %69 = sbr.rel (0) target = $region21
    $region20: #{tpu_custom_call.1} parent=1 // pred_region
      %71 = vsyncadd [#allocation10], 0
      %s73 = sshll.u32 %s4, 4
      %s74 = int_to_ptr.hbm [resolvable:$true] %s73
      %s75 = sshll.u32 [#allocation11], 4
      %s76 = int_to_ptr.vmem [resolvable:$true] %s75
      %78 = dma.hbm_to_vmem [thread:$0]  %s74, 16, %s76, [#allocation10]
    $region21: #{tpu_custom_call.1} parent=1 // pred_fallthru
      _
    // Predicated region
    $region22: #{tpu_custom_call.1} parent=1 // pred_check
      _
    $region23: #{tpu_custom_call.1} parent=1 // pred_check_branch
      %80 = sbr.rel (0) target = $region25
    $region24: #{tpu_custom_call.1} parent=1 // pred_region
      %82 = vsyncadd [#allocation13], 0
      %s83 = sshll.u32 %s5, 4
      %s84 = int_to_ptr.hbm [resolvable:$true] %s83
      %s85 = sshll.u32 [#allocation12], 4
      %s86 = int_to_ptr.vmem [resolvable:$true] %s85
      %91 = dma.hbm_to_vmem [thread:$0]  %s84, 3072, %s86, [#allocation13], 192, 192, 12
    $region25: #{tpu_custom_call.1} parent=1 // pred_fallthru
      _
    // Predicated region
    $region26: #{tpu_custom_call.1} parent=1 // pred_check
      _
    $region27: #{tpu_custom_call.1} parent=1 // pred_check_branch
      %93 = sbr.rel (0) target = $region29
    $region28: #{tpu_custom_call.1} parent=1 // pred_region
      _
    $region29: #{tpu_custom_call.1} parent=1 // pred_fallthru
      _
    // Predicated region
    $region30: #{tpu_custom_call.1} parent=1 // pred_check
      _
    $region31: #{tpu_custom_call.1} parent=1 // pred_check_branch
      %95 = sbr.rel (0) target = $region33
    $region32: #{tpu_custom_call.1} parent=1 // pred_region
      _
    $region33: #{tpu_custom_call.1} parent=1 // pred_fallthru
      _
    // Predicated region
    $region34: #{tpu_custom_call.1} parent=1 // pred_check
      _
    $region35: #{tpu_custom_call.1} parent=1 // pred_check_branch
      %97 = sbr.rel (0) target = $region37
    $region36: #{tpu_custom_call.1} parent=1 // pred_region
      %99 = dma.done [#allocation4], 128
    $region37: #{tpu_custom_call.1} parent=1 // pred_fallthru
      _
    // Predicated region
    $region38: #{tpu_custom_call.1} parent=1 // pred_check
      _
    $region39: #{tpu_custom_call.1} parent=1 // pred_check_branch
      %101 = sbr.rel (0) target = $region41
    $region40: #{tpu_custom_call.1} parent=1 // pred_region
      %103 = dma.done [#allocation7], 1024
    $region41: #{tpu_custom_call.1} parent=1 // pred_fallthru
      _
    // Predicated region
    $region42: #{tpu_custom_call.1} parent=1 // pred_check
      _
    $region43: #{tpu_custom_call.1} parent=1 // pred_check_branch
      %105 = sbr.rel (0) target = $region45
    $region44: #{tpu_custom_call.1} parent=1 // pred_region
      %107 = dma.done [#allocation7], 16
    $region45: #{tpu_custom_call.1} parent=1 // pred_fallthru
      _
    // Predicated region
    $region46: #{tpu_custom_call.1} parent=1 // pred_check
      _
    $region47: #{tpu_custom_call.1} parent=1 // pred_check_branch
      %109 = sbr.rel (0) target = $region49
    $region48: #{tpu_custom_call.1} parent=1 // pred_region
      %111 = dma.done [#allocation10], 1024
    $region49: #{tpu_custom_call.1} parent=1 // pred_fallthru
      _
    // Predicated region
    $region50: #{tpu_custom_call.1} parent=1 // pred_check
      _
    $region51: #{tpu_custom_call.1} parent=1 // pred_check_branch
      %113 = sbr.rel (0) target = $region53
    $region52: #{tpu_custom_call.1} parent=1 // pred_region
      %115 = dma.done [#allocation10], 16
    $region53: #{tpu_custom_call.1} parent=1 // pred_fallthru
      _
    // Predicated region
    $region54: #{tpu_custom_call.1} parent=1 // pred_check
      _
    $region55: #{tpu_custom_call.1} parent=1 // pred_check_branch
      %117 = sbr.rel (0) target = $region57
    $region56: #{tpu_custom_call.1} parent=1 // pred_region
      %119 = dma.done [#allocation13], 3072
    $region57: #{tpu_custom_call.1} parent=1 // pred_fallthru
      _
    %p120 = scmp.eq.s32.totalorder 0, 0
    // Predicated region
    $region58: #{tpu_custom_call.1} parent=1 // pred_check
      %p121 = pneg %p120
    $region59: #{tpu_custom_call.1} parent=1 // pred_check_branch
      %123 = sbr.rel (%p121) target = $region61
    $region60: #{tpu_custom_call.1} parent=1 // pred_region
      %124 = vst [vmem:[#allocation2] sm:$0xff] 0.0
      %125 = vst [vmem:[#allocation2 + $0x8] sm:$0xff] 0.0
    $region61: #{tpu_custom_call.1} parent=1 // pred_fallthru
      _
    %v126 = vld [vmem:[#allocation2] sm:$0xff]
    %v127 = vld [vmem:[#allocation2 + $0x8] sm:$0xff]
    %v128 = vld [vmem:[#allocation3] sm:$0xf]
    %v129 = vld [vmem:[#allocation3 + $0x4] sm:$0xf]
    %v130 = vld [vmem:[#allocation6] sm:$0xf]
    %v131 = vld [vmem:[#allocation6 + $0x4] sm:$0xf]
    %v132 = vld [vmem:[#allocation6 + $0x8] sm:$0xf]
    %v133 = vld [vmem:[#allocation6 + $0xc] sm:$0xf]
    %v134 = vld [vmem:[#allocation6 + $0x10] sm:$0xf]
    %v135 = vld [vmem:[#allocation6 + $0x14] sm:$0xf]
    %v136 = vld [vmem:[#allocation6 + $0x18] sm:$0xf]
    %v137 = vld [vmem:[#allocation6 + $0x1c] sm:$0xf]
    %v138 = vld [vmem:[#allocation6 + $0x20] sm:$0xf]
    %v139 = vld [vmem:[#allocation6 + $0x24] sm:$0xf]
    %v140 = vld [vmem:[#allocation6 + $0x28] sm:$0xf]
    %v141 = vld [vmem:[#allocation6 + $0x2c] sm:$0xf]
    %v142 = vld [vmem:[#allocation6 + $0x30] sm:$0xf]
    %v143 = vld [vmem:[#allocation6 + $0x34] sm:$0xf]
    %v144 = vld [vmem:[#allocation6 + $0x38] sm:$0xf]
    %v145 = vld [vmem:[#allocation6 + $0x3c] sm:$0xf]
    %v148 = vunpack.c.l.b16 %v128
    %v149 = vunpack.c.l.b16 %v129
    %v150 = vpack.c.b16 %v149, %v148
    %v168 = vunpack.c.l.b16 %v130
    %v169 = vunpack.c.l.b16 %v131
    %v170 = vunpack.c.l.b16 %v132
    %v171 = vunpack.c.l.b16 %v133
    %v172 = vunpack.c.l.b16 %v134
    %v173 = vunpack.c.l.b16 %v135
    %v174 = vunpack.c.l.b16 %v136
    %v175 = vunpack.c.l.b16 %v137
    %v176 = vunpack.c.l.b16 %v138
    %v177 = vunpack.c.l.b16 %v139
    %v178 = vunpack.c.l.b16 %v140
    %v179 = vunpack.c.l.b16 %v141
    %v180 = vunpack.c.l.b16 %v142
    %v181 = vunpack.c.l.b16 %v143
    %v182 = vunpack.c.l.b16 %v144
    %v183 = vunpack.c.l.b16 %v145
    %v184 = vpack.c.b16 %v169, %v168
    %v185 = vpack.c.b16 %v171, %v170
    %v186 = vpack.c.b16 %v173, %v172
    %v187 = vpack.c.b16 %v175, %v174
    %v188 = vpack.c.b16 %v177, %v176
    %v189 = vpack.c.b16 %v179, %v178
    %v190 = vpack.c.b16 %v181, %v180
    %v191 = vpack.c.b16 %v183, %v182
    %200 = vmatpush.bf16.msra.mxu0 %v191
    %201 = vmatpush.bf16.msra.mxu0 %v190
    %202 = vmatpush.bf16.msra.mxu0 %v189
    %203 = vmatpush.bf16.msra.mxu0 %v188
    %204 = vmatpush.bf16.msra.mxu0 %v187
    %205 = vmatpush.bf16.msra.mxu0 %v186
    %206 = vmatpush.bf16.msra.mxu0 %v185
    %207 = vmatpush.bf16.msra.mxu0 %v184
    %208 = vmatmul.bf16.gmra.mxu0 %v150
    %v209 = vpop.f32.mrf.mxu0
    %v210 = vadd.f32 0.0, %v209
    %v211 = vpop.f32.mrf.mxu0
    %v212 = vadd.f32 0.0, %v211
    %213 = vdwg.mxu0
    %v214 = vadd.f32 %v126, %v210
    %v215 = vadd.f32 %v127, %v212
    %216 = vst [vmem:[#allocation2] sm:$0xff] %v214
    %217 = vst [vmem:[#allocation2 + $0x8] sm:$0xff] %v215
    // Predicated region
    $region62: #{tpu_custom_call.1} parent=1 // pred_check
      %p218 = pneg %p120
    $region63: #{tpu_custom_call.1} parent=1 // pred_check_branch
      %220 = sbr.rel (%p218) target = $region65
    $region64: #{tpu_custom_call.1} parent=1 // pred_region
      %v221 = vld [vmem:[#allocation2] sm:$0xff]
      %v222 = vld [vmem:[#allocation2 + $0x8] sm:$0xff]
      %v223 = vld [vmem:[#allocation8] sm:$0x1]
      %v225 = vperm.slane %v223, 0
      %v227 = vadd.f32 %v221, %v225
      %v228 = vadd.f32 %v222, %v225
      %vm229 = vcmp.ge.f32.partialorder %v227, 0.0
      %vm230 = vcmp.ge.f32.partialorder %v228, 0.0
      %v231 = vmul.f32 %v227, 0.01
      %v232 = vmul.f32 %v228, 0.01
      %v233 = vsel %vm229, %v227, %v231
      %v234 = vsel %vm230, %v228, %v232
      %v235 = vpack.c.bf16 %v234, %v233
      %v236 = vld [vmem:[#allocation9] sm:$0xf]
      %v237 = vld [vmem:[#allocation9 + $0x4] sm:$0xf]
      %v238 = vld [vmem:[#allocation9 + $0x8] sm:$0xf]
      %v239 = vld [vmem:[#allocation9 + $0xc] sm:$0xf]
      %v240 = vld [vmem:[#allocation9 + $0x10] sm:$0xf]
      %v241 = vld [vmem:[#allocation9 + $0x14] sm:$0xf]
      %v242 = vld [vmem:[#allocation9 + $0x18] sm:$0xf]
      %v243 = vld [vmem:[#allocation9 + $0x1c] sm:$0xf]
      %v244 = vld [vmem:[#allocation9 + $0x20] sm:$0xf]
      %v245 = vld [vmem:[#allocation9 + $0x24] sm:$0xf]
      %v246 = vld [vmem:[#allocation9 + $0x28] sm:$0xf]
      %v247 = vld [vmem:[#allocation9 + $0x2c] sm:$0xf]
      %v248 = vld [vmem:[#allocation9 + $0x30] sm:$0xf]
      %v249 = vld [vmem:[#allocation9 + $0x34] sm:$0xf]
      %v250 = vld [vmem:[#allocation9 + $0x38] sm:$0xf]
      %v251 = vld [vmem:[#allocation9 + $0x3c] sm:$0xf]
      %v252 = vld [vmem:[#allocation11] sm:$0x1]
      %v254 = vperm.slane %v252, 0
      %v272 = vunpack.c.l.b16 %v236
      %v273 = vunpack.c.l.b16 %v237
      %v274 = vunpack.c.l.b16 %v238
      %v275 = vunpack.c.l.b16 %v239
      %v276 = vunpack.c.l.b16 %v240
      %v277 = vunpack.c.l.b16 %v241
      %v278 = vunpack.c.l.b16 %v242
      %v279 = vunpack.c.l.b16 %v243
      %v280 = vunpack.c.l.b16 %v244
      %v281 = vunpack.c.l.b16 %v245
      %v282 = vunpack.c.l.b16 %v246
      %v283 = vunpack.c.l.b16 %v247
      %v284 = vunpack.c.l.b16 %v248
      %v285 = vunpack.c.l.b16 %v249
      %v286 = vunpack.c.l.b16 %v250
      %v287 = vunpack.c.l.b16 %v251
      %v288 = vpack.c.b16 %v273, %v272
      %v289 = vpack.c.b16 %v275, %v274
      %v290 = vpack.c.b16 %v277, %v276
      %v291 = vpack.c.b16 %v279, %v278
      %v292 = vpack.c.b16 %v281, %v280
      %v293 = vpack.c.b16 %v283, %v282
      %v294 = vpack.c.b16 %v285, %v284
      %v295 = vpack.c.b16 %v287, %v286
      %304 = vmatpush.bf16.msra.mxu0 %v295
      %305 = vmatpush.bf16.msra.mxu0 %v294
      %306 = vmatpush.bf16.msra.mxu0 %v293
      %307 = vmatpush.bf16.msra.mxu0 %v292
      %308 = vmatpush.bf16.msra.mxu0 %v291
      %309 = vmatpush.bf16.msra.mxu0 %v290
      %310 = vmatpush.bf16.msra.mxu0 %v289
      %311 = vmatpush.bf16.msra.mxu0 %v288
      %312 = vmatmul.bf16.gmra.mxu0 %v235
      %v313 = vpop.f32.mrf.mxu0
      %v314 = vadd.f32 %v254, %v313
      %v315 = vpop.f32.mrf.mxu0
      %v316 = vadd.f32 %v254, %v315
      %317 = vdwg.mxu0
      %vm318 = vcmp.ge.f32.partialorder %v314, 0.0
      %vm319 = vcmp.ge.f32.partialorder %v316, 0.0
      %v320 = vmul.f32 %v314, 0.01
      %v321 = vmul.f32 %v316, 0.01
      %v322 = vsel %vm318, %v314, %v320
      %v323 = vsel %vm319, %v316, %v321
      %v324 = vpack.c.bf16 %v323, %v322
      %v325 = vld [vmem:[#allocation12] sm:$0xff]
      %v326 = vld [vmem:[#allocation12 + $0x8] sm:$0xf]
      %v327 = vld [vmem:[#allocation12 + $0xc] sm:$0xff]
      %v328 = vld [vmem:[#allocation12 + $0x14] sm:$0xf]
      %v329 = vld [vmem:[#allocation12 + $0x18] sm:$0xff]
      %v330 = vld [vmem:[#allocation12 + $0x20] sm:$0xf]
      %v331 = vld [vmem:[#allocation12 + $0x24] sm:$0xff]
      %v332 = vld [vmem:[#allocation12 + $0x2c] sm:$0xf]
      %v333 = vld [vmem:[#allocation12 + $0x30] sm:$0xff]
      %v334 = vld [vmem:[#allocation12 + $0x38] sm:$0xf]
      %v335 = vld [vmem:[#allocation12 + $0x3c] sm:$0xff]
      %v336 = vld [vmem:[#allocation12 + $0x44] sm:$0xf]
      %v337 = vld [vmem:[#allocation12 + $0x48] sm:$0xff]
      %v338 = vld [vmem:[#allocation12 + $0x50] sm:$0xf]
      %v339 = vld [vmem:[#allocation12 + $0x54] sm:$0xff]
      %v340 = vld [vmem:[#allocation12 + $0x5c] sm:$0xf]
      %v341 = vld [vmem:[#allocation12 + $0x60] sm:$0xff]
      %v342 = vld [vmem:[#allocation12 + $0x68] sm:$0xf]
      %v343 = vld [vmem:[#allocation12 + $0x6c] sm:$0xff]
      %v344 = vld [vmem:[#allocation12 + $0x74] sm:$0xf]
      %v345 = vld [vmem:[#allocation12 + $0x78] sm:$0xff]
      %v346 = vld [vmem:[#allocation12 + $0x80] sm:$0xf]
      %v347 = vld [vmem:[#allocation12 + $0x84] sm:$0xff]
      %v348 = vld [vmem:[#allocation12 + $0x8c] sm:$0xf]
      %v349 = vld [vmem:[#allocation12 + $0x90] sm:$0xff]
      %v350 = vld [vmem:[#allocation12 + $0x98] sm:$0xf]
      %v351 = vld [vmem:[#allocation12 + $0x9c] sm:$0xff]
      %v352 = vld [vmem:[#allocation12 + $0xa4] sm:$0xf]
      %v353 = vld [vmem:[#allocation12 + $0xa8] sm:$0xff]
      %v354 = vld [vmem:[#allocation12 + $0xb0] sm:$0xf]
      %v355 = vld [vmem:[#allocation12 + $0xb4] sm:$0xff]
      %v356 = vld [vmem:[#allocation12 + $0xbc] sm:$0xf]
      %v357 = vld [vmem:[%s6] sm:$0x7]
      %v359 = vperm.slane %v357, 0
      %v360 = vperm.slane %v357, 1
      %v361 = vperm.slane %v357, 2
      %v397 = vunpack.c.l.b16 %v325
      %v398 = vunpack.c.h.b16 %v325
      %v399 = vunpack.c.l.b16 %v326
      %v400 = vunpack.c.l.b16 %v327
      %v401 = vunpack.c.h.b16 %v327
      %v402 = vunpack.c.l.b16 %v328
      %v403 = vunpack.c.l.b16 %v329
      %v404 = vunpack.c.h.b16 %v329
      %v405 = vunpack.c.l.b16 %v330
      %v406 = vunpack.c.l.b16 %v331
      %v407 = vunpack.c.h.b16 %v331
      %v408 = vunpack.c.l.b16 %v332
      %v409 = vunpack.c.l.b16 %v333
      %v410 = vunpack.c.h.b16 %v333
      %v411 = vunpack.c.l.b16 %v334
      %v412 = vunpack.c.l.b16 %v335
      %v413 = vunpack.c.h.b16 %v335
      %v414 = vunpack.c.l.b16 %v336
      %v415 = vunpack.c.l.b16 %v337
      %v416 = vunpack.c.h.b16 %v337
      %v417 = vunpack.c.l.b16 %v338
      %v418 = vunpack.c.l.b16 %v339
      %v419 = vunpack.c.h.b16 %v339
      %v420 = vunpack.c.l.b16 %v340
      %v421 = vunpack.c.l.b16 %v341
      %v422 = vunpack.c.h.b16 %v341
      %v423 = vunpack.c.l.b16 %v342
      %v424 = vunpack.c.l.b16 %v343
      %v425 = vunpack.c.h.b16 %v343
      %v426 = vunpack.c.l.b16 %v344
      %v427 = vunpack.c.l.b16 %v345
      %v428 = vunpack.c.h.b16 %v345
      %v429 = vunpack.c.l.b16 %v346
      %v430 = vunpack.c.l.b16 %v347
      %v431 = vunpack.c.h.b16 %v347
      %v432 = vunpack.c.l.b16 %v348
      %v433 = vunpack.c.l.b16 %v349
      %v434 = vunpack.c.h.b16 %v349
      %v435 = vunpack.c.l.b16 %v350
      %v436 = vunpack.c.l.b16 %v351
      %v437 = vunpack.c.h.b16 %v351
      %v438 = vunpack.c.l.b16 %v352
      %v439 = vunpack.c.l.b16 %v353
      %v440 = vunpack.c.h.b16 %v353
      %v441 = vunpack.c.l.b16 %v354
      %v442 = vunpack.c.l.b16 %v355
      %v443 = vunpack.c.h.b16 %v355
      %v444 = vunpack.c.l.b16 %v356
      %v445 = vpack.c.b16 %v400, %v397
      %v446 = vpack.c.b16 %v401, %v398
      %v447 = vpack.c.b16 %v402, %v399
      %v448 = vpack.c.b16 %v406, %v403
      %v449 = vpack.c.b16 %v407, %v404
      %v450 = vpack.c.b16 %v408, %v405
      %v451 = vpack.c.b16 %v412, %v409
      %v452 = vpack.c.b16 %v413, %v410
      %v453 = vpack.c.b16 %v414, %v411
      %v454 = vpack.c.b16 %v418, %v415
      %v455 = vpack.c.b16 %v419, %v416
      %v456 = vpack.c.b16 %v420, %v417
      %v457 = vpack.c.b16 %v424, %v421
      %v458 = vpack.c.b16 %v425, %v422
      %v459 = vpack.c.b16 %v426, %v423
      %v460 = vpack.c.b16 %v430, %v427
      %v461 = vpack.c.b16 %v431, %v428
      %v462 = vpack.c.b16 %v432, %v429
      %v463 = vpack.c.b16 %v436, %v433
      %v464 = vpack.c.b16 %v437, %v434
      %v465 = vpack.c.b16 %v438, %v435
      %v466 = vpack.c.b16 %v442, %v439
      %v467 = vpack.c.b16 %v443, %v440
      %v468 = vpack.c.b16 %v444, %v441
      %493 = vmatpush.bf16.msra.mxu0 %v466
      %494 = vmatpush.bf16.msra.mxu0 %v463
      %495 = vmatpush.bf16.msra.mxu0 %v460
      %496 = vmatpush.bf16.msra.mxu0 %v457
      %497 = vmatpush.bf16.msra.mxu0 %v454
      %498 = vmatpush.bf16.msra.mxu0 %v451
      %499 = vmatpush.bf16.msra.mxu0 %v448
      %500 = vmatpush.bf16.msra.mxu0 %v445
      %501 = vmatmul.bf16.gmra.mxu0 %v324
      %v502 = vpop.f32.mrf.mxu0
      %v503 = vadd.f32 %v359, %v502
      %v504 = vpop.f32.mrf.mxu0
      %v505 = vadd.f32 %v359, %v504
      %506 = vdwg.mxu0
      %507 = vmatpush.bf16.msra.mxu0 %v467
      %508 = vmatpush.bf16.msra.mxu0 %v464
      %509 = vmatpush.bf16.msra.mxu0 %v461
      %510 = vmatpush.bf16.msra.mxu0 %v458
      %511 = vmatpush.bf16.msra.mxu0 %v455
      %512 = vmatpush.bf16.msra.mxu0 %v452
      %513 = vmatpush.bf16.msra.mxu0 %v449
      %514 = vmatpush.bf16.msra.mxu0 %v446
      %515 = vmatmul.bf16.gmra.mxu0 %v324
      %v516 = vpop.f32.mrf.mxu0
      %v517 = vadd.f32 %v360, %v516
      %v518 = vpop.f32.mrf.mxu0
      %v519 = vadd.f32 %v360, %v518
      %520 = vdwg.mxu0
      %521 = vmatpush.bf16.msra.mxu0 %v468
      %522 = vmatpush.bf16.msra.mxu0 %v465
      %523 = vmatpush.bf16.msra.mxu0 %v462
      %524 = vmatpush.bf16.msra.mxu0 %v459
      %525 = vmatpush.bf16.msra.mxu0 %v456
      %526 = vmatpush.bf16.msra.mxu0 %v453
      %527 = vmatpush.bf16.msra.mxu0 %v450
      %528 = vmatpush.bf16.msra.mxu0 %v447
      %529 = vmatmul.bf16.gmra.mxu0 %v324
      %v530 = vpop.f32.mrf.mxu0
      %v531 = vadd.f32 %v361, %v530
      %v532 = vpop.f32.mrf.mxu0
      %v533 = vadd.f32 %v361, %v532
      %534 = vdwg.mxu0
      %v535 = vld [vmem:[%s7] sm:$0x7]
      %vm536 = vcmp.gt.f32.partialorder %v535, 0.5
      %v537 = vmul.f32 %v503, 1.442695
      %v538 = vpow.pop %v537
      %v539 = vmul.f32 %v517, 1.442695
      %v540 = vpow.pop %v539
      %v541 = vmul.f32 %v531, 1.442695
      %v542 = vpow.pop %v541
      %v543 = vmul.f32 %v505, 1.442695
      %v544 = vpow.pop %v543
      %v545 = vmul.f32 %v519, 1.442695
      %v546 = vpow.pop %v545
      %v547 = vmul.f32 %v533, 1.442695
      %v548 = vpow.pop %v547
      %v549 = vsel %vm536, 1, 0
      %v550 = vperm.slane %v549, 0
      %v551 = vperm.slane %v549, 1
      %v552 = vperm.slane %v549, 2
      %vm553 = vcmp.eq.s32.totalorder %v550, 1
      %vm554 = vcmp.eq.s32.totalorder %v551, 1
      %vm555 = vcmp.eq.s32.totalorder %v552, 1
      %v556 = vsel %vm553, %v538, %v503
      %v557 = vsel %vm554, %v540, %v517
      %v558 = vsel %vm555, %v542, %v531
      %v559 = vsel %vm553, %v544, %v505
      %v560 = vsel %vm554, %v546, %v519
      %v561 = vsel %vm555, %v548, %v533
      %562 = vst [vmem:[#allocation14] sm:$0xff] %v556
      %563 = vst [vmem:[#allocation14 + $0x8] sm:$0xff] %v557
      %564 = vst [vmem:[#allocation14 + $0x10] sm:$0xff] %v558
      %565 = vst [vmem:[#allocation14 + $0x18] sm:$0xff] %v559
      %566 = vst [vmem:[#allocation14 + $0x20] sm:$0xff] %v560
      %567 = vst [vmem:[#allocation14 + $0x28] sm:$0xff] %v561
    $region65: #{tpu_custom_call.1} parent=1 // pred_fallthru
      _
    // Predicated region
    $region66: #{tpu_custom_call.1} parent=1 // pred_check
      _
    $region67: #{tpu_custom_call.1} parent=1 // pred_check_branch
      %569 = sbr.rel (0) target = $region69
    $region68: #{tpu_custom_call.1} parent=1 // pred_region
      %571 = vsyncadd [#allocation5], 0
      %s572 = sshll.u32 [#allocation14], 4
      %s573 = int_to_ptr.vmem [resolvable:$true] %s572
      %s574 = sshll.u32 %s8, 4
      %s575 = int_to_ptr.hbm [resolvable:$true] %s574
      %580 = dma.vmem_to_hbm [thread:$0]  %s573, 768, %s575, [#allocation5], 384, 384, 24
    $region69: #{tpu_custom_call.1} parent=1 // pred_fallthru
      _
    // Predicated region
    $region70: #{tpu_custom_call.1} parent=1 // pred_check
      _
    $region71: #{tpu_custom_call.1} parent=1 // pred_check_branch
      %582 = sbr.rel (0) target = $region73
    $region72: #{tpu_custom_call.1} parent=1 // pred_region
      %584 = dma.done [#allocation5], 768
    $region73: #{tpu_custom_call.1} parent=1 // pred_fallthru
      _
    %585 = vsyncpa [#allocation4], 1
    %586 = vsyncpa [#allocation7], 1
    %587 = vsyncpa [#allocation10], 1
    %588 = vsyncpa [#allocation13], 1
    %589 = vsyncpa [#allocation5], 1

// kernel: tpu_custom_call.1
$region0: #{tpu_custom_call.1}
  #allocation0 [shape = 'u32[]', space=smem, size = 0x4, offset = 0x4, fixed_abs, tag = 'smem constant byte address 0x4 - core index']
  #allocation1 [shape = 'u32[72,128]{1,0:T(1,128)}', space=vmem, size = 0x9000, scoped, tag = 'internal scratch']
  #allocation2 [shape = 'f32[16,128]{1,0:T(8,128)}', space=vmem, size = 0x2000, scoped, tag = 'scratch operand']
  %s0 = inlined_call_operand.hbm [shape: bf16[16,128], index: 0, kind: input, shape index: {}]
  %s1 = inlined_call_operand.hbm [shape: bf16[128,128], index: 1, kind: input, shape index: {}]
  %s2 = inlined_call_operand.hbm [shape: f32[1,128], index: 2, kind: input, shape index: {}]
  %s3 = inlined_call_operand.hbm [shape: bf16[128,128], index: 3, kind: input, shape index: {}]
  %s4 = inlined_call_operand.hbm [shape: f32[1,128], index: 4, kind: input, shape index: {}]
  %s5 = inlined_call_operand.hbm [shape: bf16[128,384], index: 5, kind: input, shape index: {}]
  %s6 = inlined_call_operand.vmem [shape: f32[1,384], index: 6, kind: input, shape index: {}]
  %s7 = inlined_call_operand.vmem [shape: f32[1,384], index: 7, kind: input, shape index: {}]
  %s8 = inlined_call_operand.hbm [shape: f32[16,384], index: 8, kind: output, shape index: {}]
  %s9 = sld [smem:[#allocation0]]
  $region74: #{tpu_custom_call.1} parent=0
    _
  %s11 = ssub.s32 1, %s9
  %s12 = scalar_select 0, %s11, %s9
  $region1: #{tpu_custom_call.1} parent=0
    #allocation3 [shape = 'u8[4096]{0}', space=vmem, size = 0x1000, scoped, tag = 'input window, operand 0, single buffered']
    #allocation4 [shape = 's32[1]{0}', space=sflag, size = 0x4, scoped, tag = 'scoped memory for tpu_custom_call.1']
    #allocation5 [shape = 's32[1]{0}', space=sflag, size = 0x4, scoped, tag = 'scoped memory for tpu_custom_call.1']
    #allocation6 [shape = 'u8[32768]{0}', space=vmem, size = 0x8000, scoped, tag = 'input window, operand 1, single buffered']
    #allocation7 [shape = 's32[1]{0}', space=sflag, size = 0x4, scoped, tag = 'scoped memory for tpu_custom_call.1']
    #allocation8 [shape = 'u8[512]{0}', space=vmem, size = 0x400, scoped, tag = 'input window, operand 2, single buffered']
    #allocation9 [shape = 'u8[32768]{0}', space=vmem, size = 0x8000, scoped, tag = 'input window, operand 3, single buffered']
    #allocation10 [shape = 's32[1]{0}', space=sflag, size = 0x4, scoped, tag = 'scoped memory for tpu_custom_call.1']
    #allocation11 [shape = 'u8[512]{0}', space=vmem, size = 0x400, scoped, tag = 'input window, operand 4, single buffered']
    #allocation12 [shape = 'u8[98304]{0}', space=vmem, size = 0x18000, scoped, tag = 'input window, operand 5, single buffered']
    #allocation13 [shape = 's32[1]{0}', space=sflag, size = 0x4, scoped, tag = 'scoped memory for tpu_custom_call.1']
    #allocation14 [shape = 'u8[24576]{0}', space=vmem, size = 0x6000, scoped, tag = 'output window, operand 0, single buffered']
    %13 = vsyncpa [#allocation4], 0
    %14 = vsyncpa [#allocation7], 0
    %15 = vsyncpa [#allocation10], 0
    %16 = vsyncpa [#allocation13], 0
    %17 = vsyncpa [#allocation5], 0
    // Predicated region
    $region2: #{tpu_custom_call.1} parent=1 // pred_check
      _
    $region3: #{tpu_custom_call.1} parent=1 // pred_check_branch
      %19 = sbr.rel (0) target = $region5
    $region4: #{tpu_custom_call.1} parent=1 // pred_region
      %21 = vsyncadd [#allocation4], 0
      %s22 = sshll.u32 %s0, 4
      %s23 = int_to_ptr.hbm [resolvable:$true] %s22
      %s24 = sshll.u32 [#allocation3], 4
      %s25 = int_to_ptr.vmem [resolvable:$true] %s24
      %30 = dma.hbm_to_vmem [thread:$0]  %s23, 128, %s25, [#allocation4], 64, 64, 4
    $region5: #{tpu_custom_call.1} parent=1 // pred_fallthru
      _
    // Predicated region
    $region6: #{tpu_custom_call.1} parent=1 // pred_check
      _
    $region7: #{tpu_custom_call.1} parent=1 // pred_check_branch
      %32 = sbr.rel (0) target = $region9
    $region8: #{tpu_custom_call.1} parent=1 // pred_region
      %34 = vsyncadd [#allocation7], 0
      %s35 = sshll.u32 %s1, 4
      %s36 = int_to_ptr.hbm [resolvable:$true] %s35
      %s37 = sshll.u32 [#allocation6], 4
      %s38 = int_to_ptr.vmem [resolvable:$true] %s37
      %43 = dma.hbm_to_vmem [thread:$0]  %s36, 1024, %s38, [#allocation7], 64, 64, 4
    $region9: #{tpu_custom_call.1} parent=1 // pred_fallthru
      _
    // Predicated region
    $region10: #{tpu_custom_call.1} parent=1 // pred_check
      _
    $region11: #{tpu_custom_call.1} parent=1 // pred_check_branch
      %45 = sbr.rel (0) target = $region13
    $region12: #{tpu_custom_call.1} parent=1 // pred_region
      %47 = vsyncadd [#allocation7], 0
      %s49 = sshll.u32 %s2, 4
      %s50 = int_to_ptr.hbm [resolvable:$true] %s49
      %s51 = sshll.u32 [#allocation8], 4
      %s52 = int_to_ptr.vmem [resolvable:$true] %s51
      %54 = dma.hbm_to_vmem [thread:$0]  %s50, 16, %s52, [#allocation7]
    $region13: #{tpu_custom_call.1} parent=1 // pred_fallthru
      _
    // Predicated region
    $region14: #{tpu_custom_call.1} parent=1 // pred_check
      _
    $region15: #{tpu_custom_call.1} parent=1 // pred_check_branch
      %56 = sbr.rel (0) target = $region17
    $region16: #{tpu_custom_call.1} parent=1 // pred_region
      %58 = vsyncadd [#allocation10], 0
      %s59 = sshll.u32 %s3, 4
      %s60 = int_to_ptr.hbm [resolvable:$true] %s59
      %s61 = sshll.u32 [#allocation9], 4
      %s62 = int_to_ptr.vmem [resolvable:$true] %s61
      %67 = dma.hbm_to_vmem [thread:$0]  %s60, 1024, %s62, [#allocation10], 64, 64, 4
    $region17: #{tpu_custom_call.1} parent=1 // pred_fallthru
      _
    // Predicated region
    $region18: #{tpu_custom_call.1} parent=1 // pred_check
      _
    $region19: #{tpu_custom_call.1} parent=1 // pred_check_branch
      %69 = sbr.rel (0) target = $region21
    $region20: #{tpu_custom_call.1} parent=1 // pred_region
      %71 = vsyncadd [#allocation10], 0
      %s73 = sshll.u32 %s4, 4
      %s74 = int_to_ptr.hbm [resolvable:$true] %s73
      %s75 = sshll.u32 [#allocation11], 4
      %s76 = int_to_ptr.vmem [resolvable:$true] %s75
      %78 = dma.hbm_to_vmem [thread:$0]  %s74, 16, %s76, [#allocation10]
    $region21: #{tpu_custom_call.1} parent=1 // pred_fallthru
      _
    // Predicated region
    $region22: #{tpu_custom_call.1} parent=1 // pred_check
      _
    $region23: #{tpu_custom_call.1} parent=1 // pred_check_branch
      %80 = sbr.rel (0) target = $region25
    $region24: #{tpu_custom_call.1} parent=1 // pred_region
      %82 = vsyncadd [#allocation13], 0
      %s83 = sshll.u32 %s5, 4
      %s84 = int_to_ptr.hbm [resolvable:$true] %s83
      %s85 = sshll.u32 [#allocation12], 4
      %s86 = int_to_ptr.vmem [resolvable:$true] %s85
      %91 = dma.hbm_to_vmem [thread:$0]  %s84, 3072, %s86, [#allocation13], 192, 192, 12
    $region25: #{tpu_custom_call.1} parent=1 // pred_fallthru
      _
    // Predicated region
    $region26: #{tpu_custom_call.1} parent=1 // pred_check
      _
    $region27: #{tpu_custom_call.1} parent=1 // pred_check_branch
      %93 = sbr.rel (0) target = $region29
    $region28: #{tpu_custom_call.1} parent=1 // pred_region
      _
    $region29: #{tpu_custom_call.1} parent=1 // pred_fallthru
      _
    // Predicated region
    $region30: #{tpu_custom_call.1} parent=1 // pred_check
      _
    $region31: #{tpu_custom_call.1} parent=1 // pred_check_branch
      %95 = sbr.rel (0) target = $region33
    $region32: #{tpu_custom_call.1} parent=1 // pred_region
      _
    $region33: #{tpu_custom_call.1} parent=1 // pred_fallthru
      _
    // Predicated region
    $region34: #{tpu_custom_call.1} parent=1 // pred_check
      _
    $region35: #{tpu_custom_call.1} parent=1 // pred_check_branch
      %97 = sbr.rel (0) target = $region37
    $region36: #{tpu_custom_call.1} parent=1 // pred_region
      %99 = dma.done [#allocation4], 128
    $region37: #{tpu_custom_call.1} parent=1 // pred_fallthru
      _
    // Predicated region
    $region38: #{tpu_custom_call.1} parent=1 // pred_check
      _
    $region39: #{tpu_custom_call.1} parent=1 // pred_check_branch
      %101 = sbr.rel (0) target = $region41
    $region40: #{tpu_custom_call.1} parent=1 // pred_region
      %103 = dma.done [#allocation7], 1024
    $region41: #{tpu_custom_call.1} parent=1 // pred_fallthru
      _
    // Predicated region
    $region42: #{tpu_custom_call.1} parent=1 // pred_check
      _
    $region43: #{tpu_custom_call.1} parent=1 // pred_check_branch
      %105 = sbr.rel (0) target = $region45
    $region44: #{tpu_custom_call.1} parent=1 // pred_region
      %107 = dma.done [#allocation7], 16
    $region45: #{tpu_custom_call.1} parent=1 // pred_fallthru
      _
    // Predicated region
    $region46: #{tpu_custom_call.1} parent=1 // pred_check
      _
    $region47: #{tpu_custom_call.1} parent=1 // pred_check_branch
      %109 = sbr.rel (0) target = $region49
    $region48: #{tpu_custom_call.1} parent=1 // pred_region
      %111 = dma.done [#allocation10], 1024
    $region49: #{tpu_custom_call.1} parent=1 // pred_fallthru
      _
    // Predicated region
    $region50: #{tpu_custom_call.1} parent=1 // pred_check
      _
    $region51: #{tpu_custom_call.1} parent=1 // pred_check_branch
      %113 = sbr.rel (0) target = $region53
    $region52: #{tpu_custom_call.1} parent=1 // pred_region
      %115 = dma.done [#allocation10], 16
    $region53: #{tpu_custom_call.1} parent=1 // pred_fallthru
      _
    // Predicated region
    $region54: #{tpu_custom_call.1} parent=1 // pred_check
      _
    $region55: #{tpu_custom_call.1} parent=1 // pred_check_branch
      %117 = sbr.rel (0) target = $region57
    $region56: #{tpu_custom_call.1} parent=1 // pred_region
      %119 = dma.done [#allocation13], 3072
    $region57: #{tpu_custom_call.1} parent=1 // pred_fallthru
      _
    %p120 = scmp.eq.s32.totalorder 0, 0
    // Predicated region
    $region58: #{tpu_custom_call.1} parent=1 // pred_check
      %p121 = pneg %p120
    $region59: #{tpu_custom_call.1} parent=1 // pred_check_branch
      %123 = sbr.rel (%p121) target = $region61
    $region60: #{tpu_custom_call.1} parent=1 // pred_region
      %124 = vst [vmem:[#allocation2] sm:$0xff] 0.0
      %125 = vst [vmem:[#allocation2 + $0x8] sm:$0xff] 0.0
    $region61: #{tpu_custom_call.1} parent=1 // pred_fallthru
      _
    %v126 = vld [vmem:[#allocation2] sm:$0xff]
    %v127 = vld [vmem:[#allocation2 + $0x8] sm:$0xff]
    %v128 = vld [vmem:[#allocation3] sm:$0xf]
    %v129 = vld [vmem:[#allocation3 + $0x4] sm:$0xf]
    %v130 = vld [vmem:[#allocation6] sm:$0xf]
    %v131 = vld [vmem:[#allocation6 + $0x4] sm:$0xf]
    %v132 = vld [vmem:[#allocation6 + $0x8] sm:$0xf]
    %v133 = vld [vmem:[#allocation6 + $0xc] sm:$0xf]
    %v134 = vld [vmem:[#allocation6 + $0x10] sm:$0xf]
    %v135 = vld [vmem:[#allocation6 + $0x14] sm:$0xf]
    %v136 = vld [vmem:[#allocation6 + $0x18] sm:$0xf]
    %v137 = vld [vmem:[#allocation6 + $0x1c] sm:$0xf]
    %v138 = vld [vmem:[#allocation6 + $0x20] sm:$0xf]
    %v139 = vld [vmem:[#allocation6 + $0x24] sm:$0xf]
    %v140 = vld [vmem:[#allocation6 + $0x28] sm:$0xf]
    %v141 = vld [vmem:[#allocation6 + $0x2c] sm:$0xf]
    %v142 = vld [vmem:[#allocation6 + $0x30] sm:$0xf]
    %v143 = vld [vmem:[#allocation6 + $0x34] sm:$0xf]
    %v144 = vld [vmem:[#allocation6 + $0x38] sm:$0xf]
    %v145 = vld [vmem:[#allocation6 + $0x3c] sm:$0xf]
    %v148 = vunpack.c.l.b16 %v128
    %v149 = vunpack.c.l.b16 %v129
    %v150 = vpack.c.b16 %v149, %v148
    %v168 = vunpack.c.l.b16 %v130
    %v169 = vunpack.c.l.b16 %v131
    %v170 = vunpack.c.l.b16 %v132
    %v171 = vunpack.c.l.b16 %v133
    %v172 = vunpack.c.l.b16 %v134
    %v173 = vunpack.c.l.b16 %v135
    %v174 = vunpack.c.l.b16 %v136
    %v175 = vunpack.c.l.b16 %v137
    %v176 = vunpack.c.l.b16 %v138
    %v177 = vunpack.c.l.b16 %v139
    %v178 = vunpack.c.l.b16 %v140
    %v179 = vunpack.c.l.b16 %v141
    %v180 = vunpack.c.l.b16 %v142
    %v181 = vunpack.c.l.b16 %v143
    %v182 = vunpack.c.l.b16 %v144
    %v183 = vunpack.c.l.b16 %v145
    %v184 = vpack.c.b16 %v169, %v168
    %v185 = vpack.c.b16 %v171, %v170
    %v186 = vpack.c.b16 %v173, %v172
    %v187 = vpack.c.b16 %v175, %v174
    %v188 = vpack.c.b16 %v177, %v176
    %v189 = vpack.c.b16 %v179, %v178
    %v190 = vpack.c.b16 %v181, %v180
    %v191 = vpack.c.b16 %v183, %v182
    %200 = vmatpush.bf16.msra.mxu0 %v191
    %201 = vmatpush.bf16.msra.mxu0 %v190
    %202 = vmatpush.bf16.msra.mxu0 %v189
    %203 = vmatpush.bf16.msra.mxu0 %v188
    %204 = vmatpush.bf16.msra.mxu0 %v187
    %205 = vmatpush.bf16.msra.mxu0 %v186
    %206 = vmatpush.bf16.msra.mxu0 %v185
    %207 = vmatpush.bf16.msra.mxu0 %v184
    %208 = vmatmul.bf16.gmra.mxu0 %v150
    %v209 = vpop.f32.mrf.mxu0
    %v210 = vadd.f32 0.0, %v209
    %v211 = vpop.f32.mrf.mxu0
    %v212 = vadd.f32 0.0, %v211
    %213 = vdwg.mxu0
    %v214 = vadd.f32 %v126, %v210
    %v215 = vadd.f32 %v127, %v212
    %216 = vst [vmem:[#allocation2] sm:$0xff] %v214
    %217 = vst [vmem:[#allocation2 + $0x8] sm:$0xff] %v215
    // Predicated region
    $region62: #{tpu_custom_call.1} parent=1 // pred_check
      %p218 = pneg %p120
    $region63: #{tpu_custom_call.1} parent=1 // pred_check_branch
      %220 = sbr.rel (%p218) target = $region65
    $region64: #{tpu_custom_call.1} parent=1 // pred_region
      %v221 = vld [vmem:[#allocation2] sm:$0xff]
      %v222 = vld [vmem:[#allocation2 + $0x8] sm:$0xff]
      %v223 = vld [vmem:[#allocation8] sm:$0x1]
      %v225 = vperm.slane %v223, 0
      %v227 = vadd.f32 %v221, %v225
      %v228 = vadd.f32 %v222, %v225
      %vm229 = vcmp.ge.f32.partialorder %v227, 0.0
      %vm230 = vcmp.ge.f32.partialorder %v228, 0.0
      %v231 = vmul.f32 %v227, 0.01
      %v232 = vmul.f32 %v228, 0.01
      %v233 = vsel %vm229, %v227, %v231
      %v234 = vsel %vm230, %v228, %v232
      %v235 = vpack.c.bf16 %v234, %v233
      %v236 = vld [vmem:[#allocation9] sm:$0xf]
      %v237 = vld [vmem:[#allocation9 + $0x4] sm:$0xf]
      %v238 = vld [vmem:[#allocation9 + $0x8] sm:$0xf]
      %v239 = vld [vmem:[#allocation9 + $0xc] sm:$0xf]
      %v240 = vld [vmem:[#allocation9 + $0x10] sm:$0xf]
      %v241 = vld [vmem:[#allocation9 + $0x14] sm:$0xf]
      %v242 = vld [vmem:[#allocation9 + $0x18] sm:$0xf]
      %v243 = vld [vmem:[#allocation9 + $0x1c] sm:$0xf]
      %v244 = vld [vmem:[#allocation9 + $0x20] sm:$0xf]
      %v245 = vld [vmem:[#allocation9 + $0x24] sm:$0xf]
      %v246 = vld [vmem:[#allocation9 + $0x28] sm:$0xf]
      %v247 = vld [vmem:[#allocation9 + $0x2c] sm:$0xf]
      %v248 = vld [vmem:[#allocation9 + $0x30] sm:$0xf]
      %v249 = vld [vmem:[#allocation9 + $0x34] sm:$0xf]
      %v250 = vld [vmem:[#allocation9 + $0x38] sm:$0xf]
      %v251 = vld [vmem:[#allocation9 + $0x3c] sm:$0xf]
      %v252 = vld [vmem:[#allocation11] sm:$0x1]
      %v254 = vperm.slane %v252, 0
      %v272 = vunpack.c.l.b16 %v236
      %v273 = vunpack.c.l.b16 %v237
      %v274 = vunpack.c.l.b16 %v238
      %v275 = vunpack.c.l.b16 %v239
      %v276 = vunpack.c.l.b16 %v240
      %v277 = vunpack.c.l.b16 %v241
      %v278 = vunpack.c.l.b16 %v242
      %v279 = vunpack.c.l.b16 %v243
      %v280 = vunpack.c.l.b16 %v244
      %v281 = vunpack.c.l.b16 %v245
      %v282 = vunpack.c.l.b16 %v246
      %v283 = vunpack.c.l.b16 %v247
      %v284 = vunpack.c.l.b16 %v248
      %v285 = vunpack.c.l.b16 %v249
      %v286 = vunpack.c.l.b16 %v250
      %v287 = vunpack.c.l.b16 %v251
      %v288 = vpack.c.b16 %v273, %v272
      %v289 = vpack.c.b16 %v275, %v274
      %v290 = vpack.c.b16 %v277, %v276
      %v291 = vpack.c.b16 %v279, %v278
      %v292 = vpack.c.b16 %v281, %v280
      %v293 = vpack.c.b16 %v283, %v282
      %v294 = vpack.c.b16 %v285, %v284
      %v295 = vpack.c.b16 %v287, %v286
      %304 = vmatpush.bf16.msra.mxu0 %v295
      %305 = vmatpush.bf16.msra.mxu0 %v294
      %306 = vmatpush.bf16.msra.mxu0 %v293
      %307 = vmatpush.bf16.msra.mxu0 %v292
      %308 = vmatpush.bf16.msra.mxu0 %v291
      %309 = vmatpush.bf16.msra.mxu0 %v290
      %310 = vmatpush.bf16.msra.mxu0 %v289
      %311 = vmatpush.bf16.msra.mxu0 %v288
      %312 = vmatmul.bf16.gmra.mxu0 %v235
      %v313 = vpop.f32.mrf.mxu0
      %v314 = vadd.f32 %v254, %v313
      %v315 = vpop.f32.mrf.mxu0
      %v316 = vadd.f32 %v254, %v315
      %317 = vdwg.mxu0
      %vm318 = vcmp.ge.f32.partialorder %v314, 0.0
      %vm319 = vcmp.ge.f32.partialorder %v316, 0.0
      %v320 = vmul.f32 %v314, 0.01
      %v321 = vmul.f32 %v316, 0.01
      %v322 = vsel %vm318, %v314, %v320
      %v323 = vsel %vm319, %v316, %v321
      %v324 = vpack.c.bf16 %v323, %v322
      %v325 = vld [vmem:[#allocation12] sm:$0xff]
      %v326 = vld [vmem:[#allocation12 + $0x8] sm:$0xf]
      %v327 = vld [vmem:[#allocation12 + $0xc] sm:$0xff]
      %v328 = vld [vmem:[#allocation12 + $0x14] sm:$0xf]
      %v329 = vld [vmem:[#allocation12 + $0x18] sm:$0xff]
      %v330 = vld [vmem:[#allocation12 + $0x20] sm:$0xf]
      %v331 = vld [vmem:[#allocation12 + $0x24] sm:$0xff]
      %v332 = vld [vmem:[#allocation12 + $0x2c] sm:$0xf]
      %v333 = vld [vmem:[#allocation12 + $0x30] sm:$0xff]
      %v334 = vld [vmem:[#allocation12 + $0x38] sm:$0xf]
      %v335 = vld [vmem:[#allocation12 + $0x3c] sm:$0xff]
      %v336 = vld [vmem:[#allocation12 + $0x44] sm:$0xf]
      %v337 = vld [vmem:[#allocation12 + $0x48] sm:$0xff]
      %v338 = vld [vmem:[#allocation12 + $0x50] sm:$0xf]
      %v339 = vld [vmem:[#allocation12 + $0x54] sm:$0xff]
      %v340 = vld [vmem:[#allocation12 + $0x5c] sm:$0xf]
      %v341 = vld [vmem:[#allocation12 + $0x60] sm:$0xff]
      %v342 = vld [vmem:[#allocation12 + $0x68] sm:$0xf]
      %v343 = vld [vmem:[#allocation12 + $0x6c] sm:$0xff]
      %v344 = vld [vmem:[#allocation12 + $0x74] sm:$0xf]
      %v345 = vld [vmem:[#allocation12 + $0x78] sm:$0xff]
      %v346 = vld [vmem:[#allocation12 + $0x80] sm:$0xf]
      %v347 = vld [vmem:[#allocation12 + $0x84] sm:$0xff]
      %v348 = vld [vmem:[#allocation12 + $0x8c] sm:$0xf]
      %v349 = vld [vmem:[#allocation12 + $0x90] sm:$0xff]
      %v350 = vld [vmem:[#allocation12 + $0x98] sm:$0xf]
      %v351 = vld [vmem:[#allocation12 + $0x9c] sm:$0xff]
      %v352 = vld [vmem:[#allocation12 + $0xa4] sm:$0xf]
      %v353 = vld [vmem:[#allocation12 + $0xa8] sm:$0xff]
      %v354 = vld [vmem:[#allocation12 + $0xb0] sm:$0xf]
      %v355 = vld [vmem:[#allocation12 + $0xb4] sm:$0xff]
      %v356 = vld [vmem:[#allocation12 + $0xbc] sm:$0xf]
      %v357 = vld [vmem:[%s6] sm:$0x7]
      %v359 = vperm.slane %v357, 0
      %v360 = vperm.slane %v357, 1
      %v361 = vperm.slane %v357, 2
      %v397 = vunpack.c.l.b16 %v325
      %v398 = vunpack.c.h.b16 %v325
      %v399 = vunpack.c.l.b16 %v326
      %v400 = vunpack.c.l.b16 %v327
      %v401 = vunpack.c.h.b16 %v327
      %v402 = vunpack.c.l.b16 %v328
      %v403 = vunpack.c.l.b16 %v329
      %v404 = vunpack.c.h.b16 %v329
      %v405 = vunpack.c.l.b16 %v330
      %v406 = vunpack.c.l.b16 %v331
      %v407 = vunpack.c.h.b16 %v331
      %v408 = vunpack.c.l.b16 %v332
      %v409 = vunpack.c.l.b16 %v333
      %v410 = vunpack.c.h.b16 %v333
      %v411 = vunpack.c.l.b16 %v334
      %v412 = vunpack.c.l.b16 %v335
      %v413 = vunpack.c.h.b16 %v335
      %v414 = vunpack.c.l.b16 %v336
      %v415 = vunpack.c.l.b16 %v337
      %v416 = vunpack.c.h.b16 %v337
      %v417 = vunpack.c.l.b16 %v338
      %v418 = vunpack.c.l.b16 %v339
      %v419 = vunpack.c.h.b16 %v339
      %v420 = vunpack.c.l.b16 %v340
      %v421 = vunpack.c.l.b16 %v341
      %v422 = vunpack.c.h.b16 %v341
      %v423 = vunpack.c.l.b16 %v342
      %v424 = vunpack.c.l.b16 %v343
      %v425 = vunpack.c.h.b16 %v343
      %v426 = vunpack.c.l.b16 %v344
      %v427 = vunpack.c.l.b16 %v345
      %v428 = vunpack.c.h.b16 %v345
      %v429 = vunpack.c.l.b16 %v346
      %v430 = vunpack.c.l.b16 %v347
      %v431 = vunpack.c.h.b16 %v347
      %v432 = vunpack.c.l.b16 %v348
      %v433 = vunpack.c.l.b16 %v349
      %v434 = vunpack.c.h.b16 %v349
      %v435 = vunpack.c.l.b16 %v350
      %v436 = vunpack.c.l.b16 %v351
      %v437 = vunpack.c.h.b16 %v351
      %v438 = vunpack.c.l.b16 %v352
      %v439 = vunpack.c.l.b16 %v353
      %v440 = vunpack.c.h.b16 %v353
      %v441 = vunpack.c.l.b16 %v354
      %v442 = vunpack.c.l.b16 %v355
      %v443 = vunpack.c.h.b16 %v355
      %v444 = vunpack.c.l.b16 %v356
      %v445 = vpack.c.b16 %v400, %v397
      %v446 = vpack.c.b16 %v401, %v398
      %v447 = vpack.c.b16 %v402, %v399
      %v448 = vpack.c.b16 %v406, %v403
      %v449 = vpack.c.b16 %v407, %v404
      %v450 = vpack.c.b16 %v408, %v405
      %v451 = vpack.c.b16 %v412, %v409
      %v452 = vpack.c.b16 %v413, %v410
      %v453 = vpack.c.b16 %v414, %v411
      %v454 = vpack.c.b16 %v418, %v415
      %v455 = vpack.c.b16 %v419, %v416
      %v456 = vpack.c.b16 %v420, %v417
      %v457 = vpack.c.b16 %v424, %v421
      %v458 = vpack.c.b16 %v425, %v422
      %v459 = vpack.c.b16 %v426, %v423
      %v460 = vpack.c.b16 %v430, %v427
      %v461 = vpack.c.b16 %v431, %v428
      %v462 = vpack.c.b16 %v432, %v429
      %v463 = vpack.c.b16 %v436, %v433
      %v464 = vpack.c.b16 %v437, %v434
      %v465 = vpack.c.b16 %v438, %v435
      %v466 = vpack.c.b16 %v442, %v439
      %v467 = vpack.c.b16 %v443, %v440
      %v468 = vpack.c.b16 %v444, %v441
      %493 = vmatpush.bf16.msra.mxu0 %v466
      %494 = vmatpush.bf16.msra.mxu0 %v463
      %495 = vmatpush.bf16.msra.mxu0 %v460
      %496 = vmatpush.bf16.msra.mxu0 %v457
      %497 = vmatpush.bf16.msra.mxu0 %v454
      %498 = vmatpush.bf16.msra.mxu0 %v451
      %499 = vmatpush.bf16.msra.mxu0 %v448
      %500 = vmatpush.bf16.msra.mxu0 %v445
      %501 = vmatmul.bf16.gmra.mxu0 %v324
      %v502 = vpop.f32.mrf.mxu0
      %v503 = vadd.f32 %v359, %v502
      %v504 = vpop.f32.mrf.mxu0
      %v505 = vadd.f32 %v359, %v504
      %506 = vdwg.mxu0
      %507 = vmatpush.bf16.msra.mxu0 %v467
      %508 = vmatpush.bf16.msra.mxu0 %v464
      %509 = vmatpush.bf16.msra.mxu0 %v461
      %510 = vmatpush.bf16.msra.mxu0 %v458
      %511 = vmatpush.bf16.msra.mxu0 %v455
      %512 = vmatpush.bf16.msra.mxu0 %v452
      %513 = vmatpush.bf16.msra.mxu0 %v449
      %514 = vmatpush.bf16.msra.mxu0 %v446
      %515 = vmatmul.bf16.gmra.mxu0 %v324
      %v516 = vpop.f32.mrf.mxu0
      %v517 = vadd.f32 %v360, %v516
      %v518 = vpop.f32.mrf.mxu0
      %v519 = vadd.f32 %v360, %v518
      %520 = vdwg.mxu0
      %521 = vmatpush.bf16.msra.mxu0 %v468
      %522 = vmatpush.bf16.msra.mxu0 %v465
      %523 = vmatpush.bf16.msra.mxu0 %v462
      %524 = vmatpush.bf16.msra.mxu0 %v459
      %525 = vmatpush.bf16.msra.mxu0 %v456
      %526 = vmatpush.bf16.msra.mxu0 %v453
      %527 = vmatpush.bf16.msra.mxu0 %v450
      %528 = vmatpush.bf16.msra.mxu0 %v447
      %529 = vmatmul.bf16.gmra.mxu0 %v324
      %v530 = vpop.f32.mrf.mxu0
      %v531 = vadd.f32 %v361, %v530
      %v532 = vpop.f32.mrf.mxu0
      %v533 = vadd.f32 %v361, %v532
      %534 = vdwg.mxu0
      %v535 = vld [vmem:[%s7] sm:$0x7]
      %vm536 = vcmp.gt.f32.partialorder %v535, 0.5
      %v537 = vmul.f32 %v503, 1.442695
      %v538 = vpow.pop %v537
      %v539 = vmul.f32 %v517, 1.442695
      %v540 = vpow.pop %v539
      %v541 = vmul.f32 %v531, 1.442695
      %v542 = vpow.pop %v541
      %v543 = vmul.f32 %v505, 1.442695
      %v544 = vpow.pop %v543
      %v545 = vmul.f32 %v519, 1.442695
      %v546 = vpow.pop %v545
      %v547 = vmul.f32 %v533, 1.442695
      %v548 = vpow.pop %v547
      %v549 = vsel %vm536, 1, 0
      %v550 = vperm.slane %v549, 0
      %v551 = vperm.slane %v549, 1
      %v552 = vperm.slane %v549, 2
      %vm553 = vcmp.eq.s32.totalorder %v550, 1
      %vm554 = vcmp.eq.s32.totalorder %v551, 1
      %vm555 = vcmp.eq.s32.totalorder %v552, 1
      %v556 = vsel %vm553, %v538, %v503
      %v557 = vsel %vm554, %v540, %v517
      %v558 = vsel %vm555, %v542, %v531
      %v559 = vsel %vm553, %v544, %v505
      %v560 = vsel %vm554, %v546, %v519
      %v561 = vsel %vm555, %v548, %v533
      %562 = vst [vmem:[#allocation14] sm:$0xff] %v556
      %563 = vst [vmem:[#allocation14 + $0x8] sm:$0xff] %v557
      %564 = vst [vmem:[#allocation14 + $0x10] sm:$0xff] %v558
      %565 = vst [vmem:[#allocation14 + $0x18] sm:$0xff] %v559
      %566 = vst [vmem:[#allocation14 + $0x20] sm:$0xff] %v560
      %567 = vst [vmem:[#allocation14 + $0x28] sm:$0xff] %v561
    $region65: #{tpu_custom_call.1} parent=1 // pred_fallthru
      _
    // Predicated region
    $region66: #{tpu_custom_call.1} parent=1 // pred_check
      _
    $region67: #{tpu_custom_call.1} parent=1 // pred_check_branch
      %569 = sbr.rel (0) target = $region69
    $region68: #{tpu_custom_call.1} parent=1 // pred_region
      %571 = vsyncadd [#allocation5], 0
      %s572 = sshll.u32 [#allocation14], 4
      %s573 = int_to_ptr.vmem [resolvable:$true] %s572
      %s574 = sshll.u32 %s8, 4
      %s575 = int_to_ptr.hbm [resolvable:$true] %s574
      %580 = dma.vmem_to_hbm [thread:$0]  %s573, 768, %s575, [#allocation5], 384, 384, 24
    $region69: #{tpu_custom_call.1} parent=1 // pred_fallthru
      _
    // Predicated region
    $region70: #{tpu_custom_call.1} parent=1 // pred_check
      _
    $region71: #{tpu_custom_call.1} parent=1 // pred_check_branch
      %582 = sbr.rel (0) target = $region73
    $region72: #{tpu_custom_call.1} parent=1 // pred_region
      %584 = dma.done [#allocation5], 768
    $region73: #{tpu_custom_call.1} parent=1 // pred_fallthru
      _
    %585 = vsyncpa [#allocation4], 1
    %586 = vsyncpa [#allocation7], 1
    %587 = vsyncpa [#allocation10], 1
    %588 = vsyncpa [#allocation13], 1
    %589 = vsyncpa [#allocation5], 1

</llo_original>
